<compile_context>
chip_gen: v5e
topology: v5e:2x2
jax: 0.10.0
libtpu: 0.0.40
codegen_flags: <defaults>
</compile_context>

<pallas_src>
import math
import jax
import jax.numpy as jnp
from jax.experimental import pallas as pl
from jax.experimental.pallas import tpu as pltpu

# Small shapes consistent with the module (config.hs, config.num_passes, BERT dim 768)
B, N = 2, 8
EVENT_DIM = 768        # fc = nn.Linear(768, hs); ffc = Linear(event_dim + hs, 1) => 768
HS = 32                # config.hs
NUM_PASSES = 3         # config.num_passes
BN = B * N             # 16 query rows
NBN = N * BN           # 128: facts stacked along the sublane (M) axis


def _full_spec(shape):
    nd = len(shape)
    return pl.BlockSpec(shape, lambda i, nd=nd: (0,) * nd)


# ----------------------------------------------------------------- fused forward kernel
def _mha_fused_kernel(xo_ref, w_in_ref, bfc_ref, w1_ref, b1_ref, w2_ref, b2_ref,
                      wm_ref, bm_ref, wfm_ref, bf_ref, rf_ref, rq_ref, ss_ref, y_ref):
    bf16 = jnp.bfloat16
    f32 = jnp.float32

    # ---- multiply-used invariants hoisted out of the (statically unrolled) loops ----
    w1 = w1_ref[...]              # (4HS, HS) bf16, rows ordered [f*q | |f-q| | f*m | |f-m|]
    w2 = w2_ref[...]              # (HS, 1)   bf16
    wm = wm_ref[...]              # (3HS, HS) bf16
    r_q = rq_ref[...]             # (NBN, BN) bf16 0/1 : row r -> query r // N
    s_sum = ss_ref[...]           # (BN, NBN) bf16 0/1 : sum each query's N fact rows
    # bias broadcasts hoisted (JAX does not CSE broadcast_in_dim across the unroll)
    b1b = jnp.broadcast_to(b1_ref[...], (NBN, HS))
    b2b = jnp.broadcast_to(b2_ref[...], (NBN, 1))
    bmb = jnp.broadcast_to(bm_ref[...], (BN, HS))

    # ---- fc(xo) and the xo-part of ffc in ONE (BN,768)@(768,HS+1) bf16 MXU pass ----
    fused = jnp.dot(xo_ref[...], w_in_ref[...],
                    preferred_element_type=f32)                  # (BN, HS+1) f32
    x = fused[:, :HS] + bfc_ref[...]                             # (BN, HS) == fc(xo)
    y_xo = fused[:, HS:HS + 1]                                   # (BN, 1)  == xo @ ffc_w[HS:]

    q = x                                                        # Q = x.view(B*N, hs), f32
    xb = x.astype(bf16)                                          # single cast, reused below

    # Facts/queries replicated onto the 128-row slab via 0/1 matrices on the (idle) MXU:
    #   f_big[r] = x[r % BN]   (torch D = x.repeat(N,1,1) layout, fact rows query-major)
    #   q_big[r] = x[r // N]
    f_big = jnp.dot(rf_ref[...], xb, preferred_element_type=f32)  # (NBN, HS)
    q_big = jnp.dot(r_q, xb, preferred_element_type=f32)          # (NBN, HS)
    # pass-invariant half of the attention features (hoisted out of the pass loop)
    zq = jnp.concatenate([f_big * q_big, jnp.abs(f_big - q_big)], axis=-1)  # (NBN, 2HS)

    mem = q                                                       # memory initialised with Q
    for _ in range(NUM_PASSES):                                   # static unroll (3 passes)
        m_big = jnp.dot(r_q, mem.astype(bf16), preferred_element_type=f32)  # (NBN, HS)
        zm = jnp.concatenate([f_big * m_big, jnp.abs(f_big - m_big)], axis=-1)
        z = jnp.concatenate([zq, zm], axis=-1)                    # (NBN, 4HS) = (128, 128)

        # one well-shaped (128,128)@(128,32) matmul for all facts of all queries
        h = jnp.tanh(jnp.dot(z.astype(bf16), w1,
                             preferred_element_type=f32) + b1b)   # (NBN, HS)
        s = jnp.dot(h.astype(bf16), w2,
                    preferred_element_type=f32) + b2b             # (NBN, 1)

        # softmax over each query's N facts; subtracting the GLOBAL max is exact
        # (per-query softmax is shift-invariant) and keeps exp safe for trained weights.
        p = jnp.exp(s - jnp.max(s))                               # (NBN, 1) f32

        # per-query sums of the N fact rows done on the MXU via the 0/1 summation matrix
        pf = jnp.concatenate([p * f_big, p], axis=-1).astype(bf16)    # (NBN, HS+1)
        gs = jnp.dot(s_sum, pf, preferred_element_type=f32)           # (BN, HS+1)
        ctx = gs[:, :HS] * pl.reciprocal(gs[:, HS:HS + 1], approx=True)

        mcq = jnp.concatenate([mem, ctx, q], axis=-1).astype(bf16)    # (BN, 3HS)
        mem = jax.nn.relu(jnp.dot(mcq, wm, preferred_element_type=f32) + bmb)  # (BN, HS)

    # ffc([M, xo]) = M @ ffc_w[:HS] + (xo @ ffc_w[HS:]) + b   (xo term came from `fused`)
    y_ref[...] = (jnp.dot(mem.astype(bf16), wfm_ref[...],
                          preferred_element_type=f32) + y_xo + bf_ref[...])   # (BN, 1)


# ----------------------------------------------------------------------------- wrapper
def prepare_kernel_params(p):
    """Pack / permute / bf16-cast the raw module parameters once, outside the kernel."""
    bf16 = jnp.bfloat16
    w1 = p["w1"]
    rows = jnp.arange(NBN)
    cols = jnp.arange(BN)
    # 0/1 replication matrices (fact slab row r holds fact r%BN of query r//N) and the
    # per-query fact-sum matrix — precomputed so the in-kernel work lands on the MXU.
    r_f = (rows[:, None] % BN == cols[None, :]).astype(bf16)       # (NBN, BN)
    r_q = (rows[:, None] // N == cols[None, :]).astype(bf16)       # (NBN, BN)
    s_sum = (cols[:, None] == rows[None, :] // N).astype(bf16)     # (BN, NBN)
    return dict(
        # fc weight fused with the xo-column of ffc -> one (768, HS+1) in-kernel matmul
        w_in=jnp.concatenate([p["fc_w"], p["ffc_w"][HS:]], axis=1).astype(bf16),
        b_fc=p["fc_b"],
        # w1 rows permuted to the in-kernel z column order [f*q | |f-q| | f*m | |f-m|]
        w1=jnp.concatenate([w1[0:HS], w1[2 * HS:3 * HS],
                            w1[HS:2 * HS], w1[3 * HS:4 * HS]], axis=0).astype(bf16),
        b1=p["b1"],
        w2=p["w2"].astype(bf16), b2=p["b2"],
        wm=p["wm"].astype(bf16), bm=p["bm"],
        wfm=p["ffc_w"][:HS].astype(bf16), b_ffc=p["ffc_b"],
        r_f=r_f, r_q=r_q, s_sum=s_sum,
    )


def mha_model_forward(xo, kp):
    """xo: (B, N, EVENT_DIM) event representations. Returns logits y: (B, N)."""
    # bf16 stream into the kernel: halves the only non-trivial input DMA.
    xo_flat = xo.reshape(BN, EVENT_DIM).astype(jnp.bfloat16)
    args = (xo_flat,
            kp["w_in"], kp["b_fc"],
            kp["w1"], kp["b1"],
            kp["w2"], kp["b2"],
            kp["wm"], kp["bm"],
            kp["wfm"], kp["b_ffc"],
            kp["r_f"], kp["r_q"], kp["s_sum"])
    y = pl.pallas_call(
        _mha_fused_kernel,
        out_shape=jax.ShapeDtypeStruct((BN, 1), jnp.float32),
        grid=(1,),
        in_specs=[_full_spec(a.shape) for a in args],
        out_specs=_full_spec((BN, 1)),
        compiler_params=pltpu.CompilerParams(dimension_semantics=("arbitrary",)),
    )(*args)
    return y.reshape(B, N)


# ----------------------------------------------------------------------------- main
if __name__ == "__main__":
    key = jax.random.PRNGKey(0)
    k_xo, k_fc, k_w1, k_w2, k_wm, k_ffc = jax.random.split(key, 6)

    def xavier(k, shape):
        limit = math.sqrt(6.0 / (shape[0] + shape[1]))
        return jax.random.uniform(k, shape, jnp.float32, -limit, limit)

    # deterministic parameter init (xavier_uniform weights, zero biases, as in initialize())
    params = dict(
        fc_w=xavier(k_fc, (EVENT_DIM, HS)), fc_b=jnp.zeros((1, HS), jnp.float32),
        w1=xavier(k_w1, (4 * HS, HS)),      b1=jnp.zeros((1, HS), jnp.float32),
        w2=xavier(k_w2, (HS, 1)),           b2=jnp.zeros((1, 1), jnp.float32),
        wm=xavier(k_wm, (3 * HS, HS)),      bm=jnp.zeros((1, HS), jnp.float32),
        ffc_w=xavier(k_ffc, (HS + EVENT_DIM, 1)), ffc_b=jnp.zeros((1, 1), jnp.float32),
    )

    # synthetic event representations (stand-in for the BERT EventRepModule output)
    xo = jax.random.normal(k_xo, (B, N, EVENT_DIM), jnp.float32)

    kp = prepare_kernel_params(params)
    y = jax.block_until_ready(mha_model_forward(xo, kp))

    # Pure-JAX reference of the same forward (torch D/Q layout, un-fused / un-permuted
    # weights).  It mirrors the kernel's precision policy — bf16 matmul operands with
    # f32 accumulation, and the bf16-valued fact/query/memory replication used for the
    # attention features — so the tolerance checks structure/indexing, not bf16 drift.
    def reference(xo_in, p):
        bf = jnp.bfloat16

        def mm(a, b):
            return jnp.dot(a.astype(bf), b.astype(bf), preferred_element_type=jnp.float32)

        def r16(a):  # mirror kernel's bf16-operand rounding in the replication matmuls
            return a.astype(bf).astype(jnp.float32)

        xo_f = xo_in.reshape(BN, EVENT_DIM)
        x = mm(xo_f, p["fc_w"]) + p["fc_b"]
        xb = x.reshape(B, N, HS)
        D = jnp.tile(r16(xb), (N, 1, 1))             # torch x.repeat(N,1,1): D[j] = xb[j % B]
        Q = x
        Q16 = r16(Q)
        m = Q
        for _ in range(NUM_PASSES):
            qb, mb = Q16[:, None, :], r16(m)[:, None, :]
            z = jnp.concatenate([D * qb, D * mb, jnp.abs(D - qb), jnp.abs(D - mb)], axis=-1)
            h = jnp.tanh(mm(z.reshape(BN * N, 4 * HS), p["w1"]).reshape(BN, N, HS) + p["b1"])
            s = mm(h.reshape(BN * N, HS), p["w2"]).reshape(BN, N) + p["b2"][0, 0]
            g = jax.nn.softmax(s, axis=-1)
            c = jnp.sum(g[:, :, None] * D, axis=1)
            m = jax.nn.relu(mm(jnp.concatenate([m, c, Q], axis=-1), p["wm"]) + p["bm"])
        mcat = jnp.concatenate([m.reshape(B, N, HS), xo_in], axis=-1)
        yy = mm(mcat.reshape(BN, HS + EVENT_DIM), p["ffc_w"]) + p["ffc_b"]
        return yy.reshape(B, N)

    y_ref = reference(xo, params)
    assert y.shape == (B, N), y.shape
    assert jnp.allclose(y, y_ref, rtol=1e-2, atol=1e-2), (y, y_ref)
    print("KERNEL_OK")
</pallas_src>

<mosaic_0001>
module attributes {stable_mosaic.version = 11 : i64} {
  func.func @_mha_fused_kernel(%arg0: i32, %arg1: memref<16x768xbf16, #tpu.memory_space<vmem>>, %arg2: memref<768x33xbf16, #tpu.memory_space<vmem>>, %arg3: memref<1x32xf32, #tpu.memory_space<vmem>>, %arg4: memref<128x32xbf16, #tpu.memory_space<vmem>>, %arg5: memref<1x32xf32, #tpu.memory_space<vmem>>, %arg6: memref<32x1xbf16, #tpu.memory_space<vmem>>, %arg7: memref<1x1xf32, #tpu.memory_space<vmem>>, %arg8: memref<96x32xbf16, #tpu.memory_space<vmem>>, %arg9: memref<1x32xf32, #tpu.memory_space<vmem>>, %arg10: memref<32x1xbf16, #tpu.memory_space<vmem>>, %arg11: memref<1x1xf32, #tpu.memory_space<vmem>>, %arg12: memref<128x16xbf16, #tpu.memory_space<vmem>>, %arg13: memref<128x16xbf16, #tpu.memory_space<vmem>>, %arg14: memref<16x128xbf16, #tpu.memory_space<vmem>>, %arg15: memref<16x1xf32, #tpu.memory_space<vmem>>) attributes {dimension_semantics = [#tpu.dimension_semantics<arbitrary>], iteration_bounds = array<i64: 1>, scalar_prefetch = 0 : i64, scratch_operands = 0 : i64, tpu.core_type = #tpu.core_type<tc>, window_params = [{pipeline_mode = #tpu.pipeline_mode<synchronous>, transform_indices = @transform_0, window_bounds = array<i64: 16, 768>}, {pipeline_mode = #tpu.pipeline_mode<synchronous>, transform_indices = @transform_1, window_bounds = array<i64: 768, 33>}, {pipeline_mode = #tpu.pipeline_mode<synchronous>, transform_indices = @transform_2, window_bounds = array<i64: 1, 32>}, {pipeline_mode = #tpu.pipeline_mode<synchronous>, transform_indices = @transform_3, window_bounds = array<i64: 128, 32>}, {pipeline_mode = #tpu.pipeline_mode<synchronous>, transform_indices = @transform_4, window_bounds = array<i64: 1, 32>}, {pipeline_mode = #tpu.pipeline_mode<synchronous>, transform_indices = @transform_5, window_bounds = array<i64: 32, 1>}, {pipeline_mode = #tpu.pipeline_mode<synchronous>, transform_indices = @transform_6, window_bounds = array<i64: 1, 1>}, {pipeline_mode = #tpu.pipeline_mode<synchronous>, transform_indices = @transform_7, window_bounds = array<i64: 96, 32>}, {pipeline_mode = #tpu.pipeline_mode<synchronous>, transform_indices = @transform_8, window_bounds = array<i64: 1, 32>}, {pipeline_mode = #tpu.pipeline_mode<synchronous>, transform_indices = @transform_9, window_bounds = array<i64: 32, 1>}, {pipeline_mode = #tpu.pipeline_mode<synchronous>, transform_indices = @transform_10, window_bounds = array<i64: 1, 1>}, {pipeline_mode = #tpu.pipeline_mode<synchronous>, transform_indices = @transform_11, window_bounds = array<i64: 128, 16>}, {pipeline_mode = #tpu.pipeline_mode<synchronous>, transform_indices = @transform_12, window_bounds = array<i64: 128, 16>}, {pipeline_mode = #tpu.pipeline_mode<synchronous>, transform_indices = @transform_13, window_bounds = array<i64: 16, 128>}, {pipeline_mode = #tpu.pipeline_mode<synchronous>, transform_indices = @transform_14, window_bounds = array<i64: 16, 1>}]} {
    %c0 = arith.constant 0 : index
    %c0_0 = arith.constant 0 : index
    %0 = vector.load %arg4[%c0, %c0_0] : memref<128x32xbf16, #tpu.memory_space<vmem>>, vector<128x32xbf16>
    %c0_1 = arith.constant 0 : index
    %c0_2 = arith.constant 0 : index
    %1 = vector.load %arg6[%c0_1, %c0_2] : memref<32x1xbf16, #tpu.memory_space<vmem>>, vector<32x1xbf16>
    %c0_3 = arith.constant 0 : index
    %c0_4 = arith.constant 0 : index
    %2 = vector.load %arg8[%c0_3, %c0_4] : memref<96x32xbf16, #tpu.memory_space<vmem>>, vector<96x32xbf16>
    %c0_5 = arith.constant 0 : index
    %c0_6 = arith.constant 0 : index
    %3 = vector.load %arg13[%c0_5, %c0_6] : memref<128x16xbf16, #tpu.memory_space<vmem>>, vector<128x16xbf16>
    %c0_7 = arith.constant 0 : index
    %c0_8 = arith.constant 0 : index
    %4 = vector.load %arg14[%c0_7, %c0_8] : memref<16x128xbf16, #tpu.memory_space<vmem>>, vector<16x128xbf16>
    %c0_9 = arith.constant 0 : index
    %c0_10 = arith.constant 0 : index
    %5 = vector.load %arg5[%c0_9, %c0_10] : memref<1x32xf32, #tpu.memory_space<vmem>>, vector<1x32xf32>
    %6 = vector.shape_cast %5 : vector<1x32xf32> to vector<1x32xf32>
    %7 = vector.broadcast %6 : vector<1x32xf32> to vector<128x32xf32>
    %c0_11 = arith.constant 0 : index
    %c0_12 = arith.constant 0 : index
    %8 = vector.load %arg7[%c0_11, %c0_12] : memref<1x1xf32, #tpu.memory_space<vmem>>, vector<1x1xf32>
    %9 = vector.shape_cast %8 : vector<1x1xf32> to vector<1x1xf32>
    %10 = vector.broadcast %9 : vector<1x1xf32> to vector<128x1xf32>
    %c0_13 = arith.constant 0 : index
    %c0_14 = arith.constant 0 : index
    %11 = vector.load %arg9[%c0_13, %c0_14] : memref<1x32xf32, #tpu.memory_space<vmem>>, vector<1x32xf32>
    %12 = vector.shape_cast %11 : vector<1x32xf32> to vector<1x32xf32>
    %13 = vector.broadcast %12 : vector<1x32xf32> to vector<16x32xf32>
    %c0_15 = arith.constant 0 : index
    %c0_16 = arith.constant 0 : index
    %14 = vector.load %arg1[%c0_15, %c0_16] : memref<16x768xbf16, #tpu.memory_space<vmem>>, vector<16x768xbf16>
    %c0_17 = arith.constant 0 : index
    %c0_18 = arith.constant 0 : index
    %15 = vector.load %arg2[%c0_17, %c0_18] : memref<768x33xbf16, #tpu.memory_space<vmem>>, vector<768x33xbf16>
    %cst = arith.constant dense<0.000000e+00> : vector<16x33xf32>
    %16 = tpu.matmul %14, %15, %cst {dimension_numbers = #tpu.dot_dimension_numbers<[1], [0], [0], [1], [0, 0, 1, 1], [], []>} : vector<16x768xbf16>, vector<768x33xbf16>, vector<16x33xf32> -> vector<16x33xf32>
    %17 = vector.extract_strided_slice %16 {offsets = [0, 0], sizes = [16, 32], strides = [1, 1]} : vector<16x33xf32> to vector<16x32xf32>
    %c0_19 = arith.constant 0 : index
    %c0_20 = arith.constant 0 : index
    %18 = vector.load %arg3[%c0_19, %c0_20] : memref<1x32xf32, #tpu.memory_space<vmem>>, vector<1x32xf32>
    %19 = vector.broadcast %18 : vector<1x32xf32> to vector<16x32xf32>
    %20 = arith.addf %17, %19 : vector<16x32xf32>
    %21 = vector.extract_strided_slice %16 {offsets = [0, 32], sizes = [16, 1], strides = [1, 1]} : vector<16x33xf32> to vector<16x1xf32>
    %22 = arith.truncf %20 : vector<16x32xf32> to vector<16x32xbf16>
    %c0_21 = arith.constant 0 : index
    %c0_22 = arith.constant 0 : index
    %23 = vector.load %arg12[%c0_21, %c0_22] : memref<128x16xbf16, #tpu.memory_space<vmem>>, vector<128x16xbf16>
    %cst_23 = arith.constant dense<0.000000e+00> : vector<128x32xf32>
    %24 = tpu.matmul %23, %22, %cst_23 {dimension_numbers = #tpu.dot_dimension_numbers<[1], [0], [0], [1], [0, 0, 1, 1], [], []>} : vector<128x16xbf16>, vector<16x32xbf16>, vector<128x32xf32> -> vector<128x32xf32>
    %cst_24 = arith.constant dense<0.000000e+00> : vector<128x32xf32>
    %25 = tpu.matmul %3, %22, %cst_24 {dimension_numbers = #tpu.dot_dimension_numbers<[1], [0], [0], [1], [0, 0, 1, 1], [], []>} : vector<128x16xbf16>, vector<16x32xbf16>, vector<128x32xf32> -> vector<128x32xf32>
    %26 = arith.mulf %24, %25 : vector<128x32xf32>
    %27 = arith.subf %24, %25 : vector<128x32xf32>
    %28 = math.absf %27 : vector<128x32xf32>
    %29 = tpu.concatenate %26, %28 in 1 : vector<128x32xf32>, vector<128x32xf32> -> vector<128x64xf32>
    %30 = arith.truncf %20 : vector<16x32xf32> to vector<16x32xbf16>
    %cst_25 = arith.constant dense<0.000000e+00> : vector<128x32xf32>
    %31 = tpu.matmul %3, %30, %cst_25 {dimension_numbers = #tpu.dot_dimension_numbers<[1], [0], [0], [1], [0, 0, 1, 1], [], []>} : vector<128x16xbf16>, vector<16x32xbf16>, vector<128x32xf32> -> vector<128x32xf32>
    %32 = arith.mulf %24, %31 : vector<128x32xf32>
    %33 = arith.subf %24, %31 : vector<128x32xf32>
    %34 = math.absf %33 : vector<128x32xf32>
    %35 = tpu.concatenate %32, %34 in 1 : vector<128x32xf32>, vector<128x32xf32> -> vector<128x64xf32>
    %36 = tpu.concatenate %29, %35 in 1 : vector<128x64xf32>, vector<128x64xf32> -> vector<128x128xf32>
    %37 = arith.truncf %36 : vector<128x128xf32> to vector<128x128xbf16>
    %cst_26 = arith.constant dense<0.000000e+00> : vector<128x32xf32>
    %38 = tpu.matmul %37, %0, %cst_26 {dimension_numbers = #tpu.dot_dimension_numbers<[1], [0], [0], [1], [0, 0, 1, 1], [], []>} : vector<128x128xbf16>, vector<128x32xbf16>, vector<128x32xf32> -> vector<128x32xf32>
    %39 = arith.addf %38, %7 : vector<128x32xf32>
    %40 = math.tanh %39 : vector<128x32xf32>
    %41 = arith.truncf %40 : vector<128x32xf32> to vector<128x32xbf16>
    %cst_27 = arith.constant dense<0.000000e+00> : vector<128x1xf32>
    %42 = tpu.matmul %41, %1, %cst_27 {dimension_numbers = #tpu.dot_dimension_numbers<[1], [0], [0], [1], [0, 0, 1, 1], [], []>} : vector<128x32xbf16>, vector<32x1xbf16>, vector<128x1xf32> -> vector<128x1xf32>
    %43 = arith.addf %42, %10 : vector<128x1xf32>
    %44 = vector.shape_cast %43 : vector<128x1xf32> to vector<1x128x1xf32>
    %cst_28 = arith.constant dense<0xFF800000> : vector<1xf32>
    %45 = vector.multi_reduction <maximumf>, %44, %cst_28 [1, 2] : vector<1x128x1xf32> to vector<1xf32>
    %46 = vector.shape_cast %45 : vector<1xf32> to vector<1x1x1xf32>
    %47 = vector.extract %46[0, 0, 0] : f32 from vector<1x1x1xf32>
    %48 = vector.broadcast %47 : f32 to vector<128x1xf32>
    %49 = arith.subf %43, %48 : vector<128x1xf32>
    %50 = math.exp %49 : vector<128x1xf32>
    %51 = vector.broadcast %50 : vector<128x1xf32> to vector<128x32xf32>
    %52 = arith.mulf %51, %24 : vector<128x32xf32>
    %53 = tpu.concatenate %52, %50 in 1 : vector<128x32xf32>, vector<128x1xf32> -> vector<128x33xf32>
    %54 = arith.truncf %53 : vector<128x33xf32> to vector<128x33xbf16>
    %cst_29 = arith.constant dense<0.000000e+00> : vector<16x33xf32>
    %55 = tpu.matmul %4, %54, %cst_29 {dimension_numbers = #tpu.dot_dimension_numbers<[1], [0], [0], [1], [0, 0, 1, 1], [], []>} : vector<16x128xbf16>, vector<128x33xbf16>, vector<16x33xf32> -> vector<16x33xf32>
    %56 = vector.extract_strided_slice %55 {offsets = [0, 0], sizes = [16, 32], strides = [1, 1]} : vector<16x33xf32> to vector<16x32xf32>
    %57 = vector.extract_strided_slice %55 {offsets = [0, 32], sizes = [16, 1], strides = [1, 1]} : vector<16x33xf32> to vector<16x1xf32>
    %58 = tpu.reciprocal %57 {approx = true} : vector<16x1xf32> -> vector<16x1xf32>
    %59 = vector.broadcast %58 : vector<16x1xf32> to vector<16x32xf32>
    %60 = arith.mulf %56, %59 : vector<16x32xf32>
    %61 = tpu.concatenate %20, %60, %20 in 1 : vector<16x32xf32>, vector<16x32xf32>, vector<16x32xf32> -> vector<16x96xf32>
    %62 = arith.truncf %61 : vector<16x96xf32> to vector<16x96xbf16>
    %cst_30 = arith.constant dense<0.000000e+00> : vector<16x32xf32>
    %63 = tpu.matmul %62, %2, %cst_30 {dimension_numbers = #tpu.dot_dimension_numbers<[1], [0], [0], [1], [0, 0, 1, 1], [], []>} : vector<16x96xbf16>, vector<96x32xbf16>, vector<16x32xf32> -> vector<16x32xf32>
    %64 = arith.addf %63, %13 : vector<16x32xf32>
    %cst_31 = arith.constant 0.000000e+00 : f32
    %65 = vector.broadcast %cst_31 : f32 to vector<16x32xf32>
    %66 = arith.maximumf %64, %65 : vector<16x32xf32>
    %67 = arith.truncf %66 : vector<16x32xf32> to vector<16x32xbf16>
    %cst_32 = arith.constant dense<0.000000e+00> : vector<128x32xf32>
    %68 = tpu.matmul %3, %67, %cst_32 {dimension_numbers = #tpu.dot_dimension_numbers<[1], [0], [0], [1], [0, 0, 1, 1], [], []>} : vector<128x16xbf16>, vector<16x32xbf16>, vector<128x32xf32> -> vector<128x32xf32>
    %69 = arith.mulf %24, %68 : vector<128x32xf32>
    %70 = arith.subf %24, %68 : vector<128x32xf32>
    %71 = math.absf %70 : vector<128x32xf32>
    %72 = tpu.concatenate %69, %71 in 1 : vector<128x32xf32>, vector<128x32xf32> -> vector<128x64xf32>
    %73 = tpu.concatenate %29, %72 in 1 : vector<128x64xf32>, vector<128x64xf32> -> vector<128x128xf32>
    %74 = arith.truncf %73 : vector<128x128xf32> to vector<128x128xbf16>
    %cst_33 = arith.constant dense<0.000000e+00> : vector<128x32xf32>
    %75 = tpu.matmul %74, %0, %cst_33 {dimension_numbers = #tpu.dot_dimension_numbers<[1], [0], [0], [1], [0, 0, 1, 1], [], []>} : vector<128x128xbf16>, vector<128x32xbf16>, vector<128x32xf32> -> vector<128x32xf32>
    %76 = arith.addf %75, %7 : vector<128x32xf32>
    %77 = math.tanh %76 : vector<128x32xf32>
    %78 = arith.truncf %77 : vector<128x32xf32> to vector<128x32xbf16>
    %cst_34 = arith.constant dense<0.000000e+00> : vector<128x1xf32>
    %79 = tpu.matmul %78, %1, %cst_34 {dimension_numbers = #tpu.dot_dimension_numbers<[1], [0], [0], [1], [0, 0, 1, 1], [], []>} : vector<128x32xbf16>, vector<32x1xbf16>, vector<128x1xf32> -> vector<128x1xf32>
    %80 = arith.addf %79, %10 : vector<128x1xf32>
    %81 = vector.shape_cast %80 : vector<128x1xf32> to vector<1x128x1xf32>
    %cst_35 = arith.constant dense<0xFF800000> : vector<1xf32>
    %82 = vector.multi_reduction <maximumf>, %81, %cst_35 [1, 2] : vector<1x128x1xf32> to vector<1xf32>
    %83 = vector.shape_cast %82 : vector<1xf32> to vector<1x1x1xf32>
    %84 = vector.extract %83[0, 0, 0] : f32 from vector<1x1x1xf32>
    %85 = vector.broadcast %84 : f32 to vector<128x1xf32>
    %86 = arith.subf %80, %85 : vector<128x1xf32>
    %87 = math.exp %86 : vector<128x1xf32>
    %88 = vector.broadcast %87 : vector<128x1xf32> to vector<128x32xf32>
    %89 = arith.mulf %88, %24 : vector<128x32xf32>
    %90 = tpu.concatenate %89, %87 in 1 : vector<128x32xf32>, vector<128x1xf32> -> vector<128x33xf32>
    %91 = arith.truncf %90 : vector<128x33xf32> to vector<128x33xbf16>
    %cst_36 = arith.constant dense<0.000000e+00> : vector<16x33xf32>
    %92 = tpu.matmul %4, %91, %cst_36 {dimension_numbers = #tpu.dot_dimension_numbers<[1], [0], [0], [1], [0, 0, 1, 1], [], []>} : vector<16x128xbf16>, vector<128x33xbf16>, vector<16x33xf32> -> vector<16x33xf32>
    %93 = vector.extract_strided_slice %92 {offsets = [0, 0], sizes = [16, 32], strides = [1, 1]} : vector<16x33xf32> to vector<16x32xf32>
    %94 = vector.extract_strided_slice %92 {offsets = [0, 32], sizes = [16, 1], strides = [1, 1]} : vector<16x33xf32> to vector<16x1xf32>
    %95 = tpu.reciprocal %94 {approx = true} : vector<16x1xf32> -> vector<16x1xf32>
    %96 = vector.broadcast %95 : vector<16x1xf32> to vector<16x32xf32>
    %97 = arith.mulf %93, %96 : vector<16x32xf32>
    %98 = tpu.concatenate %66, %97, %20 in 1 : vector<16x32xf32>, vector<16x32xf32>, vector<16x32xf32> -> vector<16x96xf32>
    %99 = arith.truncf %98 : vector<16x96xf32> to vector<16x96xbf16>
    %cst_37 = arith.constant dense<0.000000e+00> : vector<16x32xf32>
    %100 = tpu.matmul %99, %2, %cst_37 {dimension_numbers = #tpu.dot_dimension_numbers<[1], [0], [0], [1], [0, 0, 1, 1], [], []>} : vector<16x96xbf16>, vector<96x32xbf16>, vector<16x32xf32> -> vector<16x32xf32>
    %101 = arith.addf %100, %13 : vector<16x32xf32>
    %cst_38 = arith.constant 0.000000e+00 : f32
    %102 = vector.broadcast %cst_38 : f32 to vector<16x32xf32>
    %103 = arith.maximumf %101, %102 : vector<16x32xf32>
    %104 = arith.truncf %103 : vector<16x32xf32> to vector<16x32xbf16>
    %cst_39 = arith.constant dense<0.000000e+00> : vector<128x32xf32>
    %105 = tpu.matmul %3, %104, %cst_39 {dimension_numbers = #tpu.dot_dimension_numbers<[1], [0], [0], [1], [0, 0, 1, 1], [], []>} : vector<128x16xbf16>, vector<16x32xbf16>, vector<128x32xf32> -> vector<128x32xf32>
    %106 = arith.mulf %24, %105 : vector<128x32xf32>
    %107 = arith.subf %24, %105 : vector<128x32xf32>
    %108 = math.absf %107 : vector<128x32xf32>
    %109 = tpu.concatenate %106, %108 in 1 : vector<128x32xf32>, vector<128x32xf32> -> vector<128x64xf32>
    %110 = tpu.concatenate %29, %109 in 1 : vector<128x64xf32>, vector<128x64xf32> -> vector<128x128xf32>
    %111 = arith.truncf %110 : vector<128x128xf32> to vector<128x128xbf16>
    %cst_40 = arith.constant dense<0.000000e+00> : vector<128x32xf32>
    %112 = tpu.matmul %111, %0, %cst_40 {dimension_numbers = #tpu.dot_dimension_numbers<[1], [0], [0], [1], [0, 0, 1, 1], [], []>} : vector<128x128xbf16>, vector<128x32xbf16>, vector<128x32xf32> -> vector<128x32xf32>
    %113 = arith.addf %112, %7 : vector<128x32xf32>
    %114 = math.tanh %113 : vector<128x32xf32>
    %115 = arith.truncf %114 : vector<128x32xf32> to vector<128x32xbf16>
    %cst_41 = arith.constant dense<0.000000e+00> : vector<128x1xf32>
    %116 = tpu.matmul %115, %1, %cst_41 {dimension_numbers = #tpu.dot_dimension_numbers<[1], [0], [0], [1], [0, 0, 1, 1], [], []>} : vector<128x32xbf16>, vector<32x1xbf16>, vector<128x1xf32> -> vector<128x1xf32>
    %117 = arith.addf %116, %10 : vector<128x1xf32>
    %118 = vector.shape_cast %117 : vector<128x1xf32> to vector<1x128x1xf32>
    %cst_42 = arith.constant dense<0xFF800000> : vector<1xf32>
    %119 = vector.multi_reduction <maximumf>, %118, %cst_42 [1, 2] : vector<1x128x1xf32> to vector<1xf32>
    %120 = vector.shape_cast %119 : vector<1xf32> to vector<1x1x1xf32>
    %121 = vector.extract %120[0, 0, 0] : f32 from vector<1x1x1xf32>
    %122 = vector.broadcast %121 : f32 to vector<128x1xf32>
    %123 = arith.subf %117, %122 : vector<128x1xf32>
    %124 = math.exp %123 : vector<128x1xf32>
    %125 = vector.broadcast %124 : vector<128x1xf32> to vector<128x32xf32>
    %126 = arith.mulf %125, %24 : vector<128x32xf32>
    %127 = tpu.concatenate %126, %124 in 1 : vector<128x32xf32>, vector<128x1xf32> -> vector<128x33xf32>
    %128 = arith.truncf %127 : vector<128x33xf32> to vector<128x33xbf16>
    %cst_43 = arith.constant dense<0.000000e+00> : vector<16x33xf32>
    %129 = tpu.matmul %4, %128, %cst_43 {dimension_numbers = #tpu.dot_dimension_numbers<[1], [0], [0], [1], [0, 0, 1, 1], [], []>} : vector<16x128xbf16>, vector<128x33xbf16>, vector<16x33xf32> -> vector<16x33xf32>
    %130 = vector.extract_strided_slice %129 {offsets = [0, 0], sizes = [16, 32], strides = [1, 1]} : vector<16x33xf32> to vector<16x32xf32>
    %131 = vector.extract_strided_slice %129 {offsets = [0, 32], sizes = [16, 1], strides = [1, 1]} : vector<16x33xf32> to vector<16x1xf32>
    %132 = tpu.reciprocal %131 {approx = true} : vector<16x1xf32> -> vector<16x1xf32>
    %133 = vector.broadcast %132 : vector<16x1xf32> to vector<16x32xf32>
    %134 = arith.mulf %130, %133 : vector<16x32xf32>
    %135 = tpu.concatenate %103, %134, %20 in 1 : vector<16x32xf32>, vector<16x32xf32>, vector<16x32xf32> -> vector<16x96xf32>
    %136 = arith.truncf %135 : vector<16x96xf32> to vector<16x96xbf16>
    %cst_44 = arith.constant dense<0.000000e+00> : vector<16x32xf32>
    %137 = tpu.matmul %136, %2, %cst_44 {dimension_numbers = #tpu.dot_dimension_numbers<[1], [0], [0], [1], [0, 0, 1, 1], [], []>} : vector<16x96xbf16>, vector<96x32xbf16>, vector<16x32xf32> -> vector<16x32xf32>
    %138 = arith.addf %137, %13 : vector<16x32xf32>
    %cst_45 = arith.constant 0.000000e+00 : f32
    %139 = vector.broadcast %cst_45 : f32 to vector<16x32xf32>
    %140 = arith.maximumf %138, %139 : vector<16x32xf32>
    %141 = arith.truncf %140 : vector<16x32xf32> to vector<16x32xbf16>
    %c0_46 = arith.constant 0 : index
    %c0_47 = arith.constant 0 : index
    %142 = vector.load %arg10[%c0_46, %c0_47] : memref<32x1xbf16, #tpu.memory_space<vmem>>, vector<32x1xbf16>
    %cst_48 = arith.constant dense<0.000000e+00> : vector<16x1xf32>
    %143 = tpu.matmul %141, %142, %cst_48 {dimension_numbers = #tpu.dot_dimension_numbers<[1], [0], [0], [1], [0, 0, 1, 1], [], []>} : vector<16x32xbf16>, vector<32x1xbf16>, vector<16x1xf32> -> vector<16x1xf32>
    %144 = arith.addf %143, %21 : vector<16x1xf32>
    %c0_49 = arith.constant 0 : index
    %c0_50 = arith.constant 0 : index
    %145 = vector.load %arg11[%c0_49, %c0_50] : memref<1x1xf32, #tpu.memory_space<vmem>>, vector<1x1xf32>
    %146 = vector.broadcast %145 : vector<1x1xf32> to vector<16x1xf32>
    %147 = arith.addf %144, %146 : vector<16x1xf32>
    %c0_51 = arith.constant 0 : index
    %c0_52 = arith.constant 0 : index
    %148 = vector.load %arg15[%c0_51, %c0_52] : memref<16x1xf32, #tpu.memory_space<vmem>>, vector<16x1xf32>
    tpu.vector_store %arg15[%c0_51, %c0_52], %147 {strides = array<i32>} : memref<16x1xf32, #tpu.memory_space<vmem>>, vector<16x1xf32>,
    return
  }
  func.func @transform_0(%arg0: i32) -> (i32, i32) {
    %c0_i32 = arith.constant 0 : i32
    %c0_i32_0 = arith.constant 0 : i32
    %c0_i32_1 = arith.constant 0 : i32
    return %c0_i32, %c0_i32_0 : i32, i32
  }
  func.func @transform_1(%arg0: i32) -> (i32, i32) {
    %c0_i32 = arith.constant 0 : i32
    %c0_i32_0 = arith.constant 0 : i32
    %c0_i32_1 = arith.constant 0 : i32
    return %c0_i32, %c0_i32_0 : i32, i32
  }
  func.func @transform_2(%arg0: i32) -> (i32, i32) {
    %c0_i32 = arith.constant 0 : i32
    %c0_i32_0 = arith.constant 0 : i32
    %c0_i32_1 = arith.constant 0 : i32
    return %c0_i32, %c0_i32_0 : i32, i32
  }
  func.func @transform_3(%arg0: i32) -> (i32, i32) {
    %c0_i32 = arith.constant 0 : i32
    %c0_i32_0 = arith.constant 0 : i32
    %c0_i32_1 = arith.constant 0 : i32
    return %c0_i32, %c0_i32_0 : i32, i32
  }
  func.func @transform_4(%arg0: i32) -> (i32, i32) {
    %c0_i32 = arith.constant 0 : i32
    %c0_i32_0 = arith.constant 0 : i32
    %c0_i32_1 = arith.constant 0 : i32
    return %c0_i32, %c0_i32_0 : i32, i32
  }
  func.func @transform_5(%arg0: i32) -> (i32, i32) {
    %c0_i32 = arith.constant 0 : i32
    %c0_i32_0 = arith.constant 0 : i32
    %c0_i32_1 = arith.constant 0 : i32
    return %c0_i32, %c0_i32_0 : i32, i32
  }
  func.func @transform_6(%arg0: i32) -> (i32, i32) {
    %c0_i32 = arith.constant 0 : i32
    %c0_i32_0 = arith.constant 0 : i32
    %c0_i32_1 = arith.constant 0 : i32
    return %c0_i32, %c0_i32_0 : i32, i32
  }
  func.func @transform_7(%arg0: i32) -> (i32, i32) {
    %c0_i32 = arith.constant 0 : i32
    %c0_i32_0 = arith.constant 0 : i32
    %c0_i32_1 = arith.constant 0 : i32
    return %c0_i32, %c0_i32_0 : i32, i32
  }
  func.func @transform_8(%arg0: i32) -> (i32, i32) {
    %c0_i32 = arith.constant 0 : i32
    %c0_i32_0 = arith.constant 0 : i32
    %c0_i32_1 = arith.constant 0 : i32
    return %c0_i32, %c0_i32_0 : i32, i32
  }
  func.func @transform_9(%arg0: i32) -> (i32, i32) {
    %c0_i32 = arith.constant 0 : i32
    %c0_i32_0 = arith.constant 0 : i32
    %c0_i32_1 = arith.constant 0 : i32
    return %c0_i32, %c0_i32_0 : i32, i32
  }
  func.func @transform_10(%arg0: i32) -> (i32, i32) {
    %c0_i32 = arith.constant 0 : i32
    %c0_i32_0 = arith.constant 0 : i32
    %c0_i32_1 = arith.constant 0 : i32
    return %c0_i32, %c0_i32_0 : i32, i32
  }
  func.func @transform_11(%arg0: i32) -> (i32, i32) {
    %c0_i32 = arith.constant 0 : i32
    %c0_i32_0 = arith.constant 0 : i32
    %c0_i32_1 = arith.constant 0 : i32
    return %c0_i32, %c0_i32_0 : i32, i32
  }
  func.func @transform_12(%arg0: i32) -> (i32, i32) {
    %c0_i32 = arith.constant 0 : i32
    %c0_i32_0 = arith.constant 0 : i32
    %c0_i32_1 = arith.constant 0 : i32
    return %c0_i32, %c0_i32_0 : i32, i32
  }
  func.func @transform_13(%arg0: i32) -> (i32, i32) {
    %c0_i32 = arith.constant 0 : i32
    %c0_i32_0 = arith.constant 0 : i32
    %c0_i32_1 = arith.constant 0 : i32
    return %c0_i32, %c0_i32_0 : i32, i32
  }
  func.func @transform_14(%arg0: i32) -> (i32, i32) {
    %c0_i32 = arith.constant 0 : i32
    %c0_i32_0 = arith.constant 0 : i32
    %c0_i32_1 = arith.constant 0 : i32
    return %c0_i32, %c0_i32_0 : i32, i32
  }
}

</mosaic_0001>

<llo_original>
// kernel: tpu_custom_call.1
$region0: #{tpu_custom_call.1}
  #allocation0 [shape = 'u32[]', space=smem, size = 0x4, offset = 0x4, fixed_abs, tag = 'smem constant byte address 0x4 - core index']
  #allocation1 [shape = 'u32[72,128]{1,0:T(1,128)}', space=vmem, size = 0x9000, scoped, tag = 'internal scratch']
  #allocation2 [shape = 'f32[1,1]{1,0:T(1,128)S(1)}', space=vmem, size = 0x200, scoped, tag = 'scoped memory for tpu_custom_call.1']
  #allocation3 [shape = 'f32[1,1]{1,0:T(1,128)S(1)}', space=vmem, size = 0x200, scoped, tag = 'scoped memory for tpu_custom_call.1']
  %s0 = inlined_call_operand.vmem [shape: bf16[16,768], index: 0, kind: input, shape index: {}]
  %s1 = inlined_call_operand.vmem [shape: bf16[768,33], index: 1, kind: input, shape index: {}]
  %s2 = inlined_call_operand.vmem [shape: f32[1,32], index: 2, kind: input, shape index: {}]
  %s3 = inlined_call_operand.vmem [shape: bf16[128,32], index: 3, kind: input, shape index: {}]
  %s4 = inlined_call_operand.vmem [shape: f32[1,32], index: 4, kind: input, shape index: {}]
  %s5 = inlined_call_operand.vmem [shape: bf16[32,1], index: 5, kind: input, shape index: {}]
  %s6 = inlined_call_operand.<no memory space> [shape: f32[1,1], index: 6, kind: input, shape index: {}]
  %s7 = inlined_call_operand.vmem [shape: bf16[96,32], index: 7, kind: input, shape index: {}]
  %s8 = inlined_call_operand.vmem [shape: f32[1,32], index: 8, kind: input, shape index: {}]
  %s9 = inlined_call_operand.vmem [shape: bf16[32,1], index: 9, kind: input, shape index: {}]
  %s10 = inlined_call_operand.<no memory space> [shape: f32[1,1], index: 10, kind: input, shape index: {}]
  %s11 = inlined_call_operand.vmem [shape: bf16[128,16], index: 11, kind: input, shape index: {}]
  %s12 = inlined_call_operand.vmem [shape: bf16[128,16], index: 12, kind: input, shape index: {}]
  %s13 = inlined_call_operand.vmem [shape: bf16[16,128], index: 13, kind: input, shape index: {}]
  %s14 = inlined_call_operand.vmem [shape: f32[16,1], index: 14, kind: output, shape index: {}]
  %s15 = sld [smem:[#allocation0]]
  $region66: #{tpu_custom_call.1} parent=0
    _
  %s17 = ssub.s32 1, %s15
  %s18 = scalar_select 0, %s17, %s15
  %v19 = vstv %s6
  %20 = vst [vmem:[#allocation2] sm:$0x1] %v19
  %v21 = vstv %s10
  %22 = vst [vmem:[#allocation3] sm:$0x1] %v21
  // Predicated region
  $region2: #{tpu_custom_call.1} parent=0 // pred_check
    _
  $region3: #{tpu_custom_call.1} parent=0 // pred_check_branch
    %24 = sbr.rel (0) target = $region5
  $region4: #{tpu_custom_call.1} parent=0 // pred_region
    _
  $region5: #{tpu_custom_call.1} parent=0 // pred_fallthru
    _
  // Predicated region
  $region6: #{tpu_custom_call.1} parent=0 // pred_check
    _
  $region7: #{tpu_custom_call.1} parent=0 // pred_check_branch
    %26 = sbr.rel (0) target = $region9
  $region8: #{tpu_custom_call.1} parent=0 // pred_region
    _
  $region9: #{tpu_custom_call.1} parent=0 // pred_fallthru
    _
  // Predicated region
  $region10: #{tpu_custom_call.1} parent=0 // pred_check
    _
  $region11: #{tpu_custom_call.1} parent=0 // pred_check_branch
    %28 = sbr.rel (0) target = $region13
  $region12: #{tpu_custom_call.1} parent=0 // pred_region
    _
  $region13: #{tpu_custom_call.1} parent=0 // pred_fallthru
    _
  // Predicated region
  $region14: #{tpu_custom_call.1} parent=0 // pred_check
    _
  $region15: #{tpu_custom_call.1} parent=0 // pred_check_branch
    %30 = sbr.rel (0) target = $region17
  $region16: #{tpu_custom_call.1} parent=0 // pred_region
    _
  $region17: #{tpu_custom_call.1} parent=0 // pred_fallthru
    _
  // Predicated region
  $region18: #{tpu_custom_call.1} parent=0 // pred_check
    _
  $region19: #{tpu_custom_call.1} parent=0 // pred_check_branch
    %32 = sbr.rel (0) target = $region21
  $region20: #{tpu_custom_call.1} parent=0 // pred_region
    _
  $region21: #{tpu_custom_call.1} parent=0 // pred_fallthru
    _
  // Predicated region
  $region22: #{tpu_custom_call.1} parent=0 // pred_check
    _
  $region23: #{tpu_custom_call.1} parent=0 // pred_check_branch
    %34 = sbr.rel (0) target = $region25
  $region24: #{tpu_custom_call.1} parent=0 // pred_region
    _
  $region25: #{tpu_custom_call.1} parent=0 // pred_fallthru
    _
  // Predicated region
  $region26: #{tpu_custom_call.1} parent=0 // pred_check
    _
  $region27: #{tpu_custom_call.1} parent=0 // pred_check_branch
    %36 = sbr.rel (0) target = $region29
  $region28: #{tpu_custom_call.1} parent=0 // pred_region
    _
  $region29: #{tpu_custom_call.1} parent=0 // pred_fallthru
    _
  // Predicated region
  $region30: #{tpu_custom_call.1} parent=0 // pred_check
    _
  $region31: #{tpu_custom_call.1} parent=0 // pred_check_branch
    %38 = sbr.rel (0) target = $region33
  $region32: #{tpu_custom_call.1} parent=0 // pred_region
    _
  $region33: #{tpu_custom_call.1} parent=0 // pred_fallthru
    _
  // Predicated region
  $region34: #{tpu_custom_call.1} parent=0 // pred_check
    _
  $region35: #{tpu_custom_call.1} parent=0 // pred_check_branch
    %40 = sbr.rel (0) target = $region37
  $region36: #{tpu_custom_call.1} parent=0 // pred_region
    _
  $region37: #{tpu_custom_call.1} parent=0 // pred_fallthru
    _
  // Predicated region
  $region38: #{tpu_custom_call.1} parent=0 // pred_check
    _
  $region39: #{tpu_custom_call.1} parent=0 // pred_check_branch
    %42 = sbr.rel (0) target = $region41
  $region40: #{tpu_custom_call.1} parent=0 // pred_region
    _
  $region41: #{tpu_custom_call.1} parent=0 // pred_fallthru
    _
  // Predicated region
  $region42: #{tpu_custom_call.1} parent=0 // pred_check
    _
  $region43: #{tpu_custom_call.1} parent=0 // pred_check_branch
    %44 = sbr.rel (0) target = $region45
  $region44: #{tpu_custom_call.1} parent=0 // pred_region
    _
  $region45: #{tpu_custom_call.1} parent=0 // pred_fallthru
    _
  // Predicated region
  $region46: #{tpu_custom_call.1} parent=0 // pred_check
    _
  $region47: #{tpu_custom_call.1} parent=0 // pred_check_branch
    %46 = sbr.rel (0) target = $region49
  $region48: #{tpu_custom_call.1} parent=0 // pred_region
    _
  $region49: #{tpu_custom_call.1} parent=0 // pred_fallthru
    _
  // Predicated region
  $region50: #{tpu_custom_call.1} parent=0 // pred_check
    _
  $region51: #{tpu_custom_call.1} parent=0 // pred_check_branch
    %48 = sbr.rel (0) target = $region53
  $region52: #{tpu_custom_call.1} parent=0 // pred_region
    _
  $region53: #{tpu_custom_call.1} parent=0 // pred_fallthru
    _
  // Predicated region
  $region54: #{tpu_custom_call.1} parent=0 // pred_check
    _
  $region55: #{tpu_custom_call.1} parent=0 // pred_check_branch
    %50 = sbr.rel (0) target = $region57
  $region56: #{tpu_custom_call.1} parent=0 // pred_region
    _
  $region57: #{tpu_custom_call.1} parent=0 // pred_fallthru
    _
  %v52 = vld [vmem:[%s3] sm:$0xf]
  %v53 = vld [vmem:[%s3 + $0x4] sm:$0xf]
  %v54 = vld [vmem:[%s3 + $0x8] sm:$0xf]
  %v55 = vld [vmem:[%s3 + $0xc] sm:$0xf]
  %v56 = vld [vmem:[%s3 + $0x10] sm:$0xf]
  %v57 = vld [vmem:[%s3 + $0x14] sm:$0xf]
  %v58 = vld [vmem:[%s3 + $0x18] sm:$0xf]
  %v59 = vld [vmem:[%s3 + $0x1c] sm:$0xf]
  %v60 = vld [vmem:[%s3 + $0x20] sm:$0xf]
  %v61 = vld [vmem:[%s3 + $0x24] sm:$0xf]
  %v62 = vld [vmem:[%s3 + $0x28] sm:$0xf]
  %v63 = vld [vmem:[%s3 + $0x2c] sm:$0xf]
  %v64 = vld [vmem:[%s3 + $0x30] sm:$0xf]
  %v65 = vld [vmem:[%s3 + $0x34] sm:$0xf]
  %v66 = vld [vmem:[%s3 + $0x38] sm:$0xf]
  %v67 = vld [vmem:[%s3 + $0x3c] sm:$0xf]
  %v68 = vld [vmem:[%s5] sm:$0xf]
  %v69 = vld [vmem:[%s5 + $0x4] sm:$0xf]
  %v70 = vld [vmem:[%s5 + $0x8] sm:$0xf]
  %v71 = vld [vmem:[%s5 + $0xc] sm:$0xf]
  %v72 = vld [vmem:[%s7] sm:$0xf]
  %v73 = vld [vmem:[%s7 + $0x4] sm:$0xf]
  %v74 = vld [vmem:[%s7 + $0x8] sm:$0xf]
  %v75 = vld [vmem:[%s7 + $0xc] sm:$0xf]
  %v76 = vld [vmem:[%s7 + $0x10] sm:$0xf]
  %v77 = vld [vmem:[%s7 + $0x14] sm:$0xf]
  %v78 = vld [vmem:[%s7 + $0x18] sm:$0xf]
  %v79 = vld [vmem:[%s7 + $0x1c] sm:$0xf]
  %v80 = vld [vmem:[%s7 + $0x20] sm:$0xf]
  %v81 = vld [vmem:[%s7 + $0x24] sm:$0xf]
  %v82 = vld [vmem:[%s7 + $0x28] sm:$0xf]
  %v83 = vld [vmem:[%s7 + $0x2c] sm:$0xf]
  %v84 = vld [vmem:[%s12] sm:$0xf]
  %v85 = vld [vmem:[%s12 + $0x4] sm:$0xf]
  %v86 = vld [vmem:[%s12 + $0x8] sm:$0xf]
  %v87 = vld [vmem:[%s12 + $0xc] sm:$0xf]
  %v88 = vld [vmem:[%s12 + $0x10] sm:$0xf]
  %v89 = vld [vmem:[%s12 + $0x14] sm:$0xf]
  %v90 = vld [vmem:[%s12 + $0x18] sm:$0xf]
  %v91 = vld [vmem:[%s12 + $0x1c] sm:$0xf]
  %v92 = vld [vmem:[%s12 + $0x20] sm:$0xf]
  %v93 = vld [vmem:[%s12 + $0x24] sm:$0xf]
  %v94 = vld [vmem:[%s12 + $0x28] sm:$0xf]
  %v95 = vld [vmem:[%s12 + $0x2c] sm:$0xf]
  %v96 = vld [vmem:[%s12 + $0x30] sm:$0xf]
  %v97 = vld [vmem:[%s12 + $0x34] sm:$0xf]
  %v98 = vld [vmem:[%s12 + $0x38] sm:$0xf]
  %v99 = vld [vmem:[%s12 + $0x3c] sm:$0xf]
  %v100 = vld [vmem:[%s13] sm:$0xf]
  %v101 = vld [vmem:[%s13 + $0x4] sm:$0xf]
  %v102 = vld [vmem:[%s4] sm:$0x1]
  %v104 = vperm.slane %v102, 0
  %v106 = vld [vmem:[#allocation2] sm:$0x1]
  %v108 = vperm.slane %v106, 0
  %v110 = vld [vmem:[%s8] sm:$0x1]
  %v112 = vperm.slane %v110, 0
  %v114 = vld [vmem:[%s0] sm:$0xff]
  %v115 = vld [vmem:[%s0 + $0x8] sm:$0xff]
  %v116 = vld [vmem:[%s0 + $0x10] sm:$0xff]
  %v117 = vld [vmem:[%s0 + $0x18] sm:$0xff]
  %v118 = vld [vmem:[%s0 + $0x20] sm:$0xff]
  %v119 = vld [vmem:[%s0 + $0x28] sm:$0xff]
  %v120 = vld [vmem:[%s1] sm:$0xf]
  %v121 = vld [vmem:[%s1 + $0x4] sm:$0xf]
  %v122 = vld [vmem:[%s1 + $0x8] sm:$0xf]
  %v123 = vld [vmem:[%s1 + $0xc] sm:$0xf]
  %v124 = vld [vmem:[%s1 + $0x10] sm:$0xf]
  %v125 = vld [vmem:[%s1 + $0x14] sm:$0xf]
  %v126 = vld [vmem:[%s1 + $0x18] sm:$0xf]
  %v127 = vld [vmem:[%s1 + $0x1c] sm:$0xf]
  %v128 = vld [vmem:[%s1 + $0x20] sm:$0xf]
  %v129 = vld [vmem:[%s1 + $0x24] sm:$0xf]
  %v130 = vld [vmem:[%s1 + $0x28] sm:$0xf]
  %v131 = vld [vmem:[%s1 + $0x2c] sm:$0xf]
  %v132 = vld [vmem:[%s1 + $0x30] sm:$0xf]
  %v133 = vld [vmem:[%s1 + $0x34] sm:$0xf]
  %v134 = vld [vmem:[%s1 + $0x38] sm:$0xf]
  %v135 = vld [vmem:[%s1 + $0x3c] sm:$0xf]
  %v136 = vld [vmem:[%s1 + $0x40] sm:$0xf]
  %v137 = vld [vmem:[%s1 + $0x44] sm:$0xf]
  %v138 = vld [vmem:[%s1 + $0x48] sm:$0xf]
  %v139 = vld [vmem:[%s1 + $0x4c] sm:$0xf]
  %v140 = vld [vmem:[%s1 + $0x50] sm:$0xf]
  %v141 = vld [vmem:[%s1 + $0x54] sm:$0xf]
  %v142 = vld [vmem:[%s1 + $0x58] sm:$0xf]
  %v143 = vld [vmem:[%s1 + $0x5c] sm:$0xf]
  %v144 = vld [vmem:[%s1 + $0x60] sm:$0xf]
  %v145 = vld [vmem:[%s1 + $0x64] sm:$0xf]
  %v146 = vld [vmem:[%s1 + $0x68] sm:$0xf]
  %v147 = vld [vmem:[%s1 + $0x6c] sm:$0xf]
  %v148 = vld [vmem:[%s1 + $0x70] sm:$0xf]
  %v149 = vld [vmem:[%s1 + $0x74] sm:$0xf]
  %v150 = vld [vmem:[%s1 + $0x78] sm:$0xf]
  %v151 = vld [vmem:[%s1 + $0x7c] sm:$0xf]
  %v152 = vld [vmem:[%s1 + $0x80] sm:$0xf]
  %v153 = vld [vmem:[%s1 + $0x84] sm:$0xf]
  %v154 = vld [vmem:[%s1 + $0x88] sm:$0xf]
  %v155 = vld [vmem:[%s1 + $0x8c] sm:$0xf]
  %v156 = vld [vmem:[%s1 + $0x90] sm:$0xf]
  %v157 = vld [vmem:[%s1 + $0x94] sm:$0xf]
  %v158 = vld [vmem:[%s1 + $0x98] sm:$0xf]
  %v159 = vld [vmem:[%s1 + $0x9c] sm:$0xf]
  %v160 = vld [vmem:[%s1 + $0xa0] sm:$0xf]
  %v161 = vld [vmem:[%s1 + $0xa4] sm:$0xf]
  %v162 = vld [vmem:[%s1 + $0xa8] sm:$0xf]
  %v163 = vld [vmem:[%s1 + $0xac] sm:$0xf]
  %v164 = vld [vmem:[%s1 + $0xb0] sm:$0xf]
  %v165 = vld [vmem:[%s1 + $0xb4] sm:$0xf]
  %v166 = vld [vmem:[%s1 + $0xb8] sm:$0xf]
  %v167 = vld [vmem:[%s1 + $0xbc] sm:$0xf]
  %v168 = vld [vmem:[%s1 + $0xc0] sm:$0xf]
  %v169 = vld [vmem:[%s1 + $0xc4] sm:$0xf]
  %v170 = vld [vmem:[%s1 + $0xc8] sm:$0xf]
  %v171 = vld [vmem:[%s1 + $0xcc] sm:$0xf]
  %v172 = vld [vmem:[%s1 + $0xd0] sm:$0xf]
  %v173 = vld [vmem:[%s1 + $0xd4] sm:$0xf]
  %v174 = vld [vmem:[%s1 + $0xd8] sm:$0xf]
  %v175 = vld [vmem:[%s1 + $0xdc] sm:$0xf]
  %v176 = vld [vmem:[%s1 + $0xe0] sm:$0xf]
  %v177 = vld [vmem:[%s1 + $0xe4] sm:$0xf]
  %v178 = vld [vmem:[%s1 + $0xe8] sm:$0xf]
  %v179 = vld [vmem:[%s1 + $0xec] sm:$0xf]
  %v180 = vld [vmem:[%s1 + $0xf0] sm:$0xf]
  %v181 = vld [vmem:[%s1 + $0xf4] sm:$0xf]
  %v182 = vld [vmem:[%s1 + $0xf8] sm:$0xf]
  %v183 = vld [vmem:[%s1 + $0xfc] sm:$0xf]
  %v184 = vld [vmem:[%s1 + $0x100] sm:$0xf]
  %v185 = vld [vmem:[%s1 + $0x104] sm:$0xf]
  %v186 = vld [vmem:[%s1 + $0x108] sm:$0xf]
  %v187 = vld [vmem:[%s1 + $0x10c] sm:$0xf]
  %v188 = vld [vmem:[%s1 + $0x110] sm:$0xf]
  %v189 = vld [vmem:[%s1 + $0x114] sm:$0xf]
  %v190 = vld [vmem:[%s1 + $0x118] sm:$0xf]
  %v191 = vld [vmem:[%s1 + $0x11c] sm:$0xf]
  %v192 = vld [vmem:[%s1 + $0x120] sm:$0xf]
  %v193 = vld [vmem:[%s1 + $0x124] sm:$0xf]
  %v194 = vld [vmem:[%s1 + $0x128] sm:$0xf]
  %v195 = vld [vmem:[%s1 + $0x12c] sm:$0xf]
  %v196 = vld [vmem:[%s1 + $0x130] sm:$0xf]
  %v197 = vld [vmem:[%s1 + $0x134] sm:$0xf]
  %v198 = vld [vmem:[%s1 + $0x138] sm:$0xf]
  %v199 = vld [vmem:[%s1 + $0x13c] sm:$0xf]
  %v200 = vld [vmem:[%s1 + $0x140] sm:$0xf]
  %v201 = vld [vmem:[%s1 + $0x144] sm:$0xf]
  %v202 = vld [vmem:[%s1 + $0x148] sm:$0xf]
  %v203 = vld [vmem:[%s1 + $0x14c] sm:$0xf]
  %v204 = vld [vmem:[%s1 + $0x150] sm:$0xf]
  %v205 = vld [vmem:[%s1 + $0x154] sm:$0xf]
  %v206 = vld [vmem:[%s1 + $0x158] sm:$0xf]
  %v207 = vld [vmem:[%s1 + $0x15c] sm:$0xf]
  %v208 = vld [vmem:[%s1 + $0x160] sm:$0xf]
  %v209 = vld [vmem:[%s1 + $0x164] sm:$0xf]
  %v210 = vld [vmem:[%s1 + $0x168] sm:$0xf]
  %v211 = vld [vmem:[%s1 + $0x16c] sm:$0xf]
  %v212 = vld [vmem:[%s1 + $0x170] sm:$0xf]
  %v213 = vld [vmem:[%s1 + $0x174] sm:$0xf]
  %v214 = vld [vmem:[%s1 + $0x178] sm:$0xf]
  %v215 = vld [vmem:[%s1 + $0x17c] sm:$0xf]
  %v222 = vunpack.c.l.b16 %v114
  %v223 = vunpack.c.h.b16 %v114
  %v224 = vunpack.c.l.b16 %v115
  %v225 = vunpack.c.h.b16 %v115
  %v226 = vunpack.c.l.b16 %v116
  %v227 = vunpack.c.h.b16 %v116
  %v228 = vunpack.c.l.b16 %v117
  %v229 = vunpack.c.h.b16 %v117
  %v230 = vunpack.c.l.b16 %v118
  %v231 = vunpack.c.h.b16 %v118
  %v232 = vunpack.c.l.b16 %v119
  %v233 = vunpack.c.h.b16 %v119
  %v234 = vpack.c.b16 %v228, %v222
  %v235 = vpack.c.b16 %v229, %v223
  %v236 = vpack.c.b16 %v230, %v224
  %v237 = vpack.c.b16 %v231, %v225
  %v238 = vpack.c.b16 %v232, %v226
  %v239 = vpack.c.b16 %v233, %v227
  %v342 = vunpack.c.l.b16 %v120
  %v343 = vunpack.c.l.b16 %v121
  %v344 = vunpack.c.l.b16 %v122
  %v345 = vunpack.c.l.b16 %v123
  %v346 = vunpack.c.l.b16 %v124
  %v347 = vunpack.c.l.b16 %v125
  %v348 = vunpack.c.l.b16 %v126
  %v349 = vunpack.c.l.b16 %v127
  %v350 = vunpack.c.l.b16 %v128
  %v351 = vunpack.c.l.b16 %v129
  %v352 = vunpack.c.l.b16 %v130
  %v353 = vunpack.c.l.b16 %v131
  %v354 = vunpack.c.l.b16 %v132
  %v355 = vunpack.c.l.b16 %v133
  %v356 = vunpack.c.l.b16 %v134
  %v357 = vunpack.c.l.b16 %v135
  %v358 = vunpack.c.l.b16 %v136
  %v359 = vunpack.c.l.b16 %v137
  %v360 = vunpack.c.l.b16 %v138
  %v361 = vunpack.c.l.b16 %v139
  %v362 = vunpack.c.l.b16 %v140
  %v363 = vunpack.c.l.b16 %v141
  %v364 = vunpack.c.l.b16 %v142
  %v365 = vunpack.c.l.b16 %v143
  %v366 = vunpack.c.l.b16 %v144
  %v367 = vunpack.c.l.b16 %v145
  %v368 = vunpack.c.l.b16 %v146
  %v369 = vunpack.c.l.b16 %v147
  %v370 = vunpack.c.l.b16 %v148
  %v371 = vunpack.c.l.b16 %v149
  %v372 = vunpack.c.l.b16 %v150
  %v373 = vunpack.c.l.b16 %v151
  %v374 = vunpack.c.l.b16 %v152
  %v375 = vunpack.c.l.b16 %v153
  %v376 = vunpack.c.l.b16 %v154
  %v377 = vunpack.c.l.b16 %v155
  %v378 = vunpack.c.l.b16 %v156
  %v379 = vunpack.c.l.b16 %v157
  %v380 = vunpack.c.l.b16 %v158
  %v381 = vunpack.c.l.b16 %v159
  %v382 = vunpack.c.l.b16 %v160
  %v383 = vunpack.c.l.b16 %v161
  %v384 = vunpack.c.l.b16 %v162
  %v385 = vunpack.c.l.b16 %v163
  %v386 = vunpack.c.l.b16 %v164
  %v387 = vunpack.c.l.b16 %v165
  %v388 = vunpack.c.l.b16 %v166
  %v389 = vunpack.c.l.b16 %v167
  %v390 = vunpack.c.l.b16 %v168
  %v391 = vunpack.c.l.b16 %v169
  %v392 = vunpack.c.l.b16 %v170
  %v393 = vunpack.c.l.b16 %v171
  %v394 = vunpack.c.l.b16 %v172
  %v395 = vunpack.c.l.b16 %v173
  %v396 = vunpack.c.l.b16 %v174
  %v397 = vunpack.c.l.b16 %v175
  %v398 = vunpack.c.l.b16 %v176
  %v399 = vunpack.c.l.b16 %v177
  %v400 = vunpack.c.l.b16 %v178
  %v401 = vunpack.c.l.b16 %v179
  %v402 = vunpack.c.l.b16 %v180
  %v403 = vunpack.c.l.b16 %v181
  %v404 = vunpack.c.l.b16 %v182
  %v405 = vunpack.c.l.b16 %v183
  %v406 = vunpack.c.l.b16 %v184
  %v407 = vunpack.c.l.b16 %v185
  %v408 = vunpack.c.l.b16 %v186
  %v409 = vunpack.c.l.b16 %v187
  %v410 = vunpack.c.l.b16 %v188
  %v411 = vunpack.c.l.b16 %v189
  %v412 = vunpack.c.l.b16 %v190
  %v413 = vunpack.c.l.b16 %v191
  %v414 = vunpack.c.l.b16 %v192
  %v415 = vunpack.c.l.b16 %v193
  %v416 = vunpack.c.l.b16 %v194
  %v417 = vunpack.c.l.b16 %v195
  %v418 = vunpack.c.l.b16 %v196
  %v419 = vunpack.c.l.b16 %v197
  %v420 = vunpack.c.l.b16 %v198
  %v421 = vunpack.c.l.b16 %v199
  %v422 = vunpack.c.l.b16 %v200
  %v423 = vunpack.c.l.b16 %v201
  %v424 = vunpack.c.l.b16 %v202
  %v425 = vunpack.c.l.b16 %v203
  %v426 = vunpack.c.l.b16 %v204
  %v427 = vunpack.c.l.b16 %v205
  %v428 = vunpack.c.l.b16 %v206
  %v429 = vunpack.c.l.b16 %v207
  %v430 = vunpack.c.l.b16 %v208
  %v431 = vunpack.c.l.b16 %v209
  %v432 = vunpack.c.l.b16 %v210
  %v433 = vunpack.c.l.b16 %v211
  %v434 = vunpack.c.l.b16 %v212
  %v435 = vunpack.c.l.b16 %v213
  %v436 = vunpack.c.l.b16 %v214
  %v437 = vunpack.c.l.b16 %v215
  %v438 = vpack.c.b16 %v343, %v342
  %v439 = vpack.c.b16 %v345, %v344
  %v440 = vpack.c.b16 %v347, %v346
  %v441 = vpack.c.b16 %v349, %v348
  %v442 = vpack.c.b16 %v351, %v350
  %v443 = vpack.c.b16 %v353, %v352
  %v444 = vpack.c.b16 %v355, %v354
  %v445 = vpack.c.b16 %v357, %v356
  %v446 = vpack.c.b16 %v359, %v358
  %v447 = vpack.c.b16 %v361, %v360
  %v448 = vpack.c.b16 %v363, %v362
  %v449 = vpack.c.b16 %v365, %v364
  %v450 = vpack.c.b16 %v367, %v366
  %v451 = vpack.c.b16 %v369, %v368
  %v452 = vpack.c.b16 %v371, %v370
  %v453 = vpack.c.b16 %v373, %v372
  %v454 = vpack.c.b16 %v375, %v374
  %v455 = vpack.c.b16 %v377, %v376
  %v456 = vpack.c.b16 %v379, %v378
  %v457 = vpack.c.b16 %v381, %v380
  %v458 = vpack.c.b16 %v383, %v382
  %v459 = vpack.c.b16 %v385, %v384
  %v460 = vpack.c.b16 %v387, %v386
  %v461 = vpack.c.b16 %v389, %v388
  %v462 = vpack.c.b16 %v391, %v390
  %v463 = vpack.c.b16 %v393, %v392
  %v464 = vpack.c.b16 %v395, %v394
  %v465 = vpack.c.b16 %v397, %v396
  %v466 = vpack.c.b16 %v399, %v398
  %v467 = vpack.c.b16 %v401, %v400
  %v468 = vpack.c.b16 %v403, %v402
  %v469 = vpack.c.b16 %v405, %v404
  %v470 = vpack.c.b16 %v407, %v406
  %v471 = vpack.c.b16 %v409, %v408
  %v472 = vpack.c.b16 %v411, %v410
  %v473 = vpack.c.b16 %v413, %v412
  %v474 = vpack.c.b16 %v415, %v414
  %v475 = vpack.c.b16 %v417, %v416
  %v476 = vpack.c.b16 %v419, %v418
  %v477 = vpack.c.b16 %v421, %v420
  %v478 = vpack.c.b16 %v423, %v422
  %v479 = vpack.c.b16 %v425, %v424
  %v480 = vpack.c.b16 %v427, %v426
  %v481 = vpack.c.b16 %v429, %v428
  %v482 = vpack.c.b16 %v431, %v430
  %v483 = vpack.c.b16 %v433, %v432
  %v484 = vpack.c.b16 %v435, %v434
  %v485 = vpack.c.b16 %v437, %v436
  %534 = vmatpush.bf16.msra.mxu0 %v445
  %535 = vmatpush.bf16.msra.mxu0 %v444
  %536 = vmatpush.bf16.msra.mxu0 %v443
  %537 = vmatpush.bf16.msra.mxu0 %v442
  %538 = vmatpush.bf16.msra.mxu0 %v441
  %539 = vmatpush.bf16.msra.mxu0 %v440
  %540 = vmatpush.bf16.msra.mxu0 %v439
  %541 = vmatpush.bf16.msra.mxu0 %v438
  %542 = vmatmul.bf16.gmra.mxu0 %v234
  %v543 = vpop.f32.mrf.mxu0
  %v544 = vadd.f32 0.0, %v543
  %v545 = vpop.f32.mrf.mxu0
  %v546 = vadd.f32 0.0, %v545
  %547 = vdwg.mxu0
  %548 = vmatpush.bf16.msra.mxu0 %v453
  %549 = vmatpush.bf16.msra.mxu0 %v452
  %550 = vmatpush.bf16.msra.mxu0 %v451
  %551 = vmatpush.bf16.msra.mxu0 %v450
  %552 = vmatpush.bf16.msra.mxu0 %v449
  %553 = vmatpush.bf16.msra.mxu0 %v448
  %554 = vmatpush.bf16.msra.mxu0 %v447
  %555 = vmatpush.bf16.msra.mxu0 %v446
  %556 = vmatmul.bf16.gmra.mxu0 %v235
  %v557 = vpop.f32.mrf.mxu0
  %v558 = vadd.f32 %v544, %v557
  %v559 = vpop.f32.mrf.mxu0
  %v560 = vadd.f32 %v546, %v559
  %561 = vdwg.mxu0
  %562 = vmatpush.bf16.msra.mxu0 %v461
  %563 = vmatpush.bf16.msra.mxu0 %v460
  %564 = vmatpush.bf16.msra.mxu0 %v459
  %565 = vmatpush.bf16.msra.mxu0 %v458
  %566 = vmatpush.bf16.msra.mxu0 %v457
  %567 = vmatpush.bf16.msra.mxu0 %v456
  %568 = vmatpush.bf16.msra.mxu0 %v455
  %569 = vmatpush.bf16.msra.mxu0 %v454
  %570 = vmatmul.bf16.gmra.mxu0 %v236
  %v571 = vpop.f32.mrf.mxu0
  %v572 = vadd.f32 %v558, %v571
  %v573 = vpop.f32.mrf.mxu0
  %v574 = vadd.f32 %v560, %v573
  %575 = vdwg.mxu0
  %576 = vmatpush.bf16.msra.mxu0 %v469
  %577 = vmatpush.bf16.msra.mxu0 %v468
  %578 = vmatpush.bf16.msra.mxu0 %v467
  %579 = vmatpush.bf16.msra.mxu0 %v466
  %580 = vmatpush.bf16.msra.mxu0 %v465
  %581 = vmatpush.bf16.msra.mxu0 %v464
  %582 = vmatpush.bf16.msra.mxu0 %v463
  %583 = vmatpush.bf16.msra.mxu0 %v462
  %584 = vmatmul.bf16.gmra.mxu0 %v237
  %v585 = vpop.f32.mrf.mxu0
  %v586 = vadd.f32 %v572, %v585
  %v587 = vpop.f32.mrf.mxu0
  %v588 = vadd.f32 %v574, %v587
  %589 = vdwg.mxu0
  %590 = vmatpush.bf16.msra.mxu0 %v477
  %591 = vmatpush.bf16.msra.mxu0 %v476
  %592 = vmatpush.bf16.msra.mxu0 %v475
  %593 = vmatpush.bf16.msra.mxu0 %v474
  %594 = vmatpush.bf16.msra.mxu0 %v473
  %595 = vmatpush.bf16.msra.mxu0 %v472
  %596 = vmatpush.bf16.msra.mxu0 %v471
  %597 = vmatpush.bf16.msra.mxu0 %v470
  %598 = vmatmul.bf16.gmra.mxu0 %v238
  %v599 = vpop.f32.mrf.mxu0
  %v600 = vadd.f32 %v586, %v599
  %v601 = vpop.f32.mrf.mxu0
  %v602 = vadd.f32 %v588, %v601
  %603 = vdwg.mxu0
  %604 = vmatpush.bf16.msra.mxu0 %v485
  %605 = vmatpush.bf16.msra.mxu0 %v484
  %606 = vmatpush.bf16.msra.mxu0 %v483
  %607 = vmatpush.bf16.msra.mxu0 %v482
  %608 = vmatpush.bf16.msra.mxu0 %v481
  %609 = vmatpush.bf16.msra.mxu0 %v480
  %610 = vmatpush.bf16.msra.mxu0 %v479
  %611 = vmatpush.bf16.msra.mxu0 %v478
  %612 = vmatmul.bf16.gmra.mxu0 %v239
  %v613 = vpop.f32.mrf.mxu0
  %v614 = vadd.f32 %v600, %v613
  %v615 = vpop.f32.mrf.mxu0
  %v616 = vadd.f32 %v602, %v615
  %617 = vdwg.mxu0
  %v618 = vld [vmem:[%s2] sm:$0x1]
  %v620 = vperm.slane %v618, 0
  %v622 = vadd.f32 %v614, %v620
  %v623 = vadd.f32 %v616, %v620
  %v624 = vpack.c.bf16 %v623, %v622
  %v625 = vld [vmem:[%s11] sm:$0xf]
  %v626 = vld [vmem:[%s11 + $0x4] sm:$0xf]
  %v627 = vld [vmem:[%s11 + $0x8] sm:$0xf]
  %v628 = vld [vmem:[%s11 + $0xc] sm:$0xf]
  %v629 = vld [vmem:[%s11 + $0x10] sm:$0xf]
  %v630 = vld [vmem:[%s11 + $0x14] sm:$0xf]
  %v631 = vld [vmem:[%s11 + $0x18] sm:$0xf]
  %v632 = vld [vmem:[%s11 + $0x1c] sm:$0xf]
  %v633 = vld [vmem:[%s11 + $0x20] sm:$0xf]
  %v634 = vld [vmem:[%s11 + $0x24] sm:$0xf]
  %v635 = vld [vmem:[%s11 + $0x28] sm:$0xf]
  %v636 = vld [vmem:[%s11 + $0x2c] sm:$0xf]
  %v637 = vld [vmem:[%s11 + $0x30] sm:$0xf]
  %v638 = vld [vmem:[%s11 + $0x34] sm:$0xf]
  %v639 = vld [vmem:[%s11 + $0x38] sm:$0xf]
  %v640 = vld [vmem:[%s11 + $0x3c] sm:$0xf]
  %v657 = vunpack.c.l.b16 %v625
  %v658 = vunpack.c.l.b16 %v626
  %v659 = vunpack.c.l.b16 %v627
  %v660 = vunpack.c.l.b16 %v628
  %v661 = vunpack.c.l.b16 %v629
  %v662 = vunpack.c.l.b16 %v630
  %v663 = vunpack.c.l.b16 %v631
  %v664 = vunpack.c.l.b16 %v632
  %v665 = vunpack.c.l.b16 %v633
  %v666 = vunpack.c.l.b16 %v634
  %v667 = vunpack.c.l.b16 %v635
  %v668 = vunpack.c.l.b16 %v636
  %v669 = vunpack.c.l.b16 %v637
  %v670 = vunpack.c.l.b16 %v638
  %v671 = vunpack.c.l.b16 %v639
  %v672 = vunpack.c.l.b16 %v640
  %v673 = vpack.c.b16 %v658, %v657
  %v674 = vpack.c.b16 %v660, %v659
  %v675 = vpack.c.b16 %v662, %v661
  %v676 = vpack.c.b16 %v664, %v663
  %v677 = vpack.c.b16 %v666, %v665
  %v678 = vpack.c.b16 %v668, %v667
  %v679 = vpack.c.b16 %v670, %v669
  %v680 = vpack.c.b16 %v672, %v671
  %vm681 = vcmask 130048
  %v683 = vsel %vm681, %v673, 0
  %v686 = vsel %vm681, %v674, 0
  %v689 = vsel %vm681, %v675, 0
  %v692 = vsel %vm681, %v676, 0
  %v695 = vsel %vm681, %v677, 0
  %v698 = vsel %vm681, %v678, 0
  %v701 = vsel %vm681, %v679, 0
  %v704 = vsel %vm681, %v680, 0
  %706 = vmatpush.bf16.msra.mxu0 0
  %707 = vmatpush.bf16.msra.mxu0 0
  %708 = vmatpush.bf16.msra.mxu0 0
  %709 = vmatpush.bf16.msra.mxu0 0
  %710 = vmatpush.bf16.msra.mxu0 0
  %711 = vmatpush.bf16.msra.mxu0 0
  %712 = vmatpush.bf16.msra.mxu0 0
  %713 = vmatpush.bf16.msra.mxu0 %v624
  %714 = vmatmul.bf16.gmra.mxu0 %v683
  %v715 = vpop.f32.mrf.mxu0
  %v716 = vadd.f32 0.0, %v715
  %v717 = vpop.f32.mrf.mxu0
  %v718 = vadd.f32 0.0, %v717
  %719 = vmatmul.bf16.gmra.mxu0 %v686
  %v720 = vpop.f32.mrf.mxu0
  %v721 = vadd.f32 0.0, %v720
  %v722 = vpop.f32.mrf.mxu0
  %v723 = vadd.f32 0.0, %v722
  %724 = vmatmul.bf16.gmra.mxu0 %v689
  %v725 = vpop.f32.mrf.mxu0
  %v726 = vadd.f32 0.0, %v725
  %v727 = vpop.f32.mrf.mxu0
  %v728 = vadd.f32 0.0, %v727
  %729 = vmatmul.bf16.gmra.mxu0 %v692
  %v730 = vpop.f32.mrf.mxu0
  %v731 = vadd.f32 0.0, %v730
  %v732 = vpop.f32.mrf.mxu0
  %v733 = vadd.f32 0.0, %v732
  %734 = vmatmul.bf16.gmra.mxu0 %v695
  %v735 = vpop.f32.mrf.mxu0
  %v736 = vadd.f32 0.0, %v735
  %v737 = vpop.f32.mrf.mxu0
  %v738 = vadd.f32 0.0, %v737
  %739 = vmatmul.bf16.gmra.mxu0 %v698
  %v740 = vpop.f32.mrf.mxu0
  %v741 = vadd.f32 0.0, %v740
  %v742 = vpop.f32.mrf.mxu0
  %v743 = vadd.f32 0.0, %v742
  %744 = vmatmul.bf16.gmra.mxu0 %v701
  %v745 = vpop.f32.mrf.mxu0
  %v746 = vadd.f32 0.0, %v745
  %v747 = vpop.f32.mrf.mxu0
  %v748 = vadd.f32 0.0, %v747
  %749 = vmatmul.bf16.gmra.mxu0 %v704
  %v750 = vpop.f32.mrf.mxu0
  %v751 = vadd.f32 0.0, %v750
  %v752 = vpop.f32.mrf.mxu0
  %v753 = vadd.f32 0.0, %v752
  %754 = vdwg.mxu0
  %v771 = vunpack.c.l.b16 %v84
  %v772 = vunpack.c.l.b16 %v85
  %v773 = vunpack.c.l.b16 %v86
  %v774 = vunpack.c.l.b16 %v87
  %v775 = vunpack.c.l.b16 %v88
  %v776 = vunpack.c.l.b16 %v89
  %v777 = vunpack.c.l.b16 %v90
  %v778 = vunpack.c.l.b16 %v91
  %v779 = vunpack.c.l.b16 %v92
  %v780 = vunpack.c.l.b16 %v93
  %v781 = vunpack.c.l.b16 %v94
  %v782 = vunpack.c.l.b16 %v95
  %v783 = vunpack.c.l.b16 %v96
  %v784 = vunpack.c.l.b16 %v97
  %v785 = vunpack.c.l.b16 %v98
  %v786 = vunpack.c.l.b16 %v99
  %v787 = vpack.c.b16 %v772, %v771
  %v788 = vpack.c.b16 %v774, %v773
  %v789 = vpack.c.b16 %v776, %v775
  %v790 = vpack.c.b16 %v778, %v777
  %v791 = vpack.c.b16 %v780, %v779
  %v792 = vpack.c.b16 %v782, %v781
  %v793 = vpack.c.b16 %v784, %v783
  %v794 = vpack.c.b16 %v786, %v785
  %v796 = vsel %vm681, %v787, 0
  %v799 = vsel %vm681, %v788, 0
  %v802 = vsel %vm681, %v789, 0
  %v805 = vsel %vm681, %v790, 0
  %v808 = vsel %vm681, %v791, 0
  %v811 = vsel %vm681, %v792, 0
  %v814 = vsel %vm681, %v793, 0
  %v817 = vsel %vm681, %v794, 0
  %819 = vmatpush.bf16.msra.mxu0 0
  %820 = vmatpush.bf16.msra.mxu0 0
  %821 = vmatpush.bf16.msra.mxu0 0
  %822 = vmatpush.bf16.msra.mxu0 0
  %823 = vmatpush.bf16.msra.mxu0 0
  %824 = vmatpush.bf16.msra.mxu0 0
  %825 = vmatpush.bf16.msra.mxu0 0
  %826 = vmatpush.bf16.msra.mxu0 %v624
  %827 = vmatmul.bf16.gmra.mxu0 %v796
  %v828 = vpop.f32.mrf.mxu0
  %v829 = vadd.f32 0.0, %v828
  %v830 = vpop.f32.mrf.mxu0
  %v831 = vadd.f32 0.0, %v830
  %832 = vmatmul.bf16.gmra.mxu0 %v799
  %v833 = vpop.f32.mrf.mxu0
  %v834 = vadd.f32 0.0, %v833
  %v835 = vpop.f32.mrf.mxu0
  %v836 = vadd.f32 0.0, %v835
  %837 = vmatmul.bf16.gmra.mxu0 %v802
  %v838 = vpop.f32.mrf.mxu0
  %v839 = vadd.f32 0.0, %v838
  %v840 = vpop.f32.mrf.mxu0
  %v841 = vadd.f32 0.0, %v840
  %842 = vmatmul.bf16.gmra.mxu0 %v805
  %v843 = vpop.f32.mrf.mxu0
  %v844 = vadd.f32 0.0, %v843
  %v845 = vpop.f32.mrf.mxu0
  %v846 = vadd.f32 0.0, %v845
  %847 = vmatmul.bf16.gmra.mxu0 %v808
  %v848 = vpop.f32.mrf.mxu0
  %v849 = vadd.f32 0.0, %v848
  %v850 = vpop.f32.mrf.mxu0
  %v851 = vadd.f32 0.0, %v850
  %852 = vmatmul.bf16.gmra.mxu0 %v811
  %v853 = vpop.f32.mrf.mxu0
  %v854 = vadd.f32 0.0, %v853
  %v855 = vpop.f32.mrf.mxu0
  %v856 = vadd.f32 0.0, %v855
  %857 = vmatmul.bf16.gmra.mxu0 %v814
  %v858 = vpop.f32.mrf.mxu0
  %v859 = vadd.f32 0.0, %v858
  %v860 = vpop.f32.mrf.mxu0
  %v861 = vadd.f32 0.0, %v860
  %862 = vmatmul.bf16.gmra.mxu0 %v817
  %v863 = vpop.f32.mrf.mxu0
  %v864 = vadd.f32 0.0, %v863
  %v865 = vpop.f32.mrf.mxu0
  %v866 = vadd.f32 0.0, %v865
  %867 = vdwg.mxu0
  %v868 = vmul.f32 %v716, %v829
  %v869 = vmul.f32 %v718, %v831
  %v870 = vmul.f32 %v721, %v834
  %v871 = vmul.f32 %v723, %v836
  %v872 = vmul.f32 %v726, %v839
  %v873 = vmul.f32 %v728, %v841
  %v874 = vmul.f32 %v731, %v844
  %v875 = vmul.f32 %v733, %v846
  %v876 = vmul.f32 %v736, %v849
  %v877 = vmul.f32 %v738, %v851
  %v878 = vmul.f32 %v741, %v854
  %v879 = vmul.f32 %v743, %v856
  %v880 = vmul.f32 %v746, %v859
  %v881 = vmul.f32 %v748, %v861
  %v882 = vmul.f32 %v751, %v864
  %v883 = vmul.f32 %v753, %v866
  %v884 = vsub.f32 %v716, %v829
  %v885 = vsub.f32 %v718, %v831
  %v886 = vsub.f32 %v721, %v834
  %v887 = vsub.f32 %v723, %v836
  %v888 = vsub.f32 %v726, %v839
  %v889 = vsub.f32 %v728, %v841
  %v890 = vsub.f32 %v731, %v844
  %v891 = vsub.f32 %v733, %v846
  %v892 = vsub.f32 %v736, %v849
  %v893 = vsub.f32 %v738, %v851
  %v894 = vsub.f32 %v741, %v854
  %v895 = vsub.f32 %v743, %v856
  %v896 = vsub.f32 %v746, %v859
  %v897 = vsub.f32 %v748, %v861
  %v898 = vsub.f32 %v751, %v864
  %v899 = vsub.f32 %v753, %v866
  %v900 = vand.u32 2147483647, %v884
  %v901 = vand.u32 2147483647, %v885
  %v902 = vand.u32 2147483647, %v886
  %v903 = vand.u32 2147483647, %v887
  %v904 = vand.u32 2147483647, %v888
  %v905 = vand.u32 2147483647, %v889
  %v906 = vand.u32 2147483647, %v890
  %v907 = vand.u32 2147483647, %v891
  %v908 = vand.u32 2147483647, %v892
  %v909 = vand.u32 2147483647, %v893
  %v910 = vand.u32 2147483647, %v894
  %v911 = vand.u32 2147483647, %v895
  %v912 = vand.u32 2147483647, %v896
  %v913 = vand.u32 2147483647, %v897
  %v914 = vand.u32 2147483647, %v898
  %v915 = vand.u32 2147483647, %v899
  %932 = vrot.lane.b32.xlu0 %v900, 32
  %v933 = vpop.permute.xlu0 %932
  %934 = vrot.lane.b32.xlu0 %v901, 32
  %v935 = vpop.permute.xlu0 %934
  %936 = vrot.lane.b32.xlu0 %v902, 32
  %v937 = vpop.permute.xlu0 %936
  %938 = vrot.lane.b32.xlu0 %v903, 32
  %v939 = vpop.permute.xlu0 %938
  %940 = vrot.lane.b32.xlu0 %v904, 32
  %v941 = vpop.permute.xlu0 %940
  %942 = vrot.lane.b32.xlu0 %v905, 32
  %v943 = vpop.permute.xlu0 %942
  %944 = vrot.lane.b32.xlu0 %v906, 32
  %v945 = vpop.permute.xlu0 %944
  %946 = vrot.lane.b32.xlu0 %v907, 32
  %v947 = vpop.permute.xlu0 %946
  %948 = vrot.lane.b32.xlu0 %v908, 32
  %v949 = vpop.permute.xlu0 %948
  %950 = vrot.lane.b32.xlu0 %v909, 32
  %v951 = vpop.permute.xlu0 %950
  %952 = vrot.lane.b32.xlu0 %v910, 32
  %v953 = vpop.permute.xlu0 %952
  %954 = vrot.lane.b32.xlu0 %v911, 32
  %v955 = vpop.permute.xlu0 %954
  %956 = vrot.lane.b32.xlu0 %v912, 32
  %v957 = vpop.permute.xlu0 %956
  %958 = vrot.lane.b32.xlu0 %v913, 32
  %v959 = vpop.permute.xlu0 %958
  %960 = vrot.lane.b32.xlu0 %v914, 32
  %v961 = vpop.permute.xlu0 %960
  %962 = vrot.lane.b32.xlu0 %v915, 32
  %v963 = vpop.permute.xlu0 %962
  %vm980 = vcmask 261120
  %v981 = vsel %vm980, %v868, %v933
  %v982 = vsel %vm980, %v869, %v935
  %v983 = vsel %vm980, %v870, %v937
  %v984 = vsel %vm980, %v871, %v939
  %v985 = vsel %vm980, %v872, %v941
  %v986 = vsel %vm980, %v873, %v943
  %v987 = vsel %vm980, %v874, %v945
  %v988 = vsel %vm980, %v875, %v947
  %v989 = vsel %vm980, %v876, %v949
  %v990 = vsel %vm980, %v877, %v951
  %v991 = vsel %vm980, %v878, %v953
  %v992 = vsel %vm980, %v879, %v955
  %v993 = vsel %vm980, %v880, %v957
  %v994 = vsel %vm980, %v881, %v959
  %v995 = vsel %vm980, %v882, %v961
  %v996 = vsel %vm980, %v883, %v963
  %1013 = vrot.lane.b32.xlu0 %v981, 64
  %v1014 = vpop.permute.xlu0 %1013
  %1015 = vrot.lane.b32.xlu0 %v982, 64
  %v1016 = vpop.permute.xlu0 %1015
  %1017 = vrot.lane.b32.xlu0 %v983, 64
  %v1018 = vpop.permute.xlu0 %1017
  %1019 = vrot.lane.b32.xlu0 %v984, 64
  %v1020 = vpop.permute.xlu0 %1019
  %1021 = vrot.lane.b32.xlu0 %v985, 64
  %v1022 = vpop.permute.xlu0 %1021
  %1023 = vrot.lane.b32.xlu0 %v986, 64
  %v1024 = vpop.permute.xlu0 %1023
  %1025 = vrot.lane.b32.xlu0 %v987, 64
  %v1026 = vpop.permute.xlu0 %1025
  %1027 = vrot.lane.b32.xlu0 %v988, 64
  %v1028 = vpop.permute.xlu0 %1027
  %1029 = vrot.lane.b32.xlu0 %v989, 64
  %v1030 = vpop.permute.xlu0 %1029
  %1031 = vrot.lane.b32.xlu0 %v990, 64
  %v1032 = vpop.permute.xlu0 %1031
  %1033 = vrot.lane.b32.xlu0 %v991, 64
  %v1034 = vpop.permute.xlu0 %1033
  %1035 = vrot.lane.b32.xlu0 %v992, 64
  %v1036 = vpop.permute.xlu0 %1035
  %1037 = vrot.lane.b32.xlu0 %v993, 64
  %v1038 = vpop.permute.xlu0 %1037
  %1039 = vrot.lane.b32.xlu0 %v994, 64
  %v1040 = vpop.permute.xlu0 %1039
  %1041 = vrot.lane.b32.xlu0 %v995, 64
  %v1042 = vpop.permute.xlu0 %1041
  %1043 = vrot.lane.b32.xlu0 %v996, 64
  %v1044 = vpop.permute.xlu0 %1043
  %vm1061 = vcmask 523264
  %v1062 = vsel %vm1061, %v981, %v1014
  %v1063 = vsel %vm1061, %v982, %v1016
  %v1064 = vsel %vm1061, %v983, %v1018
  %v1065 = vsel %vm1061, %v984, %v1020
  %v1066 = vsel %vm1061, %v985, %v1022
  %v1067 = vsel %vm1061, %v986, %v1024
  %v1068 = vsel %vm1061, %v987, %v1026
  %v1069 = vsel %vm1061, %v988, %v1028
  %v1070 = vsel %vm1061, %v989, %v1030
  %v1071 = vsel %vm1061, %v990, %v1032
  %v1072 = vsel %vm1061, %v991, %v1034
  %v1073 = vsel %vm1061, %v992, %v1036
  %v1074 = vsel %vm1061, %v993, %v1038
  %v1075 = vsel %vm1061, %v994, %v1040
  %v1076 = vsel %vm1061, %v995, %v1042
  %v1077 = vsel %vm1061, %v996, %v1044
  %v1078 = vpack.c.bf16 %v1063, %v1062
  %v1079 = vpack.c.bf16 %v1065, %v1064
  %v1080 = vpack.c.bf16 %v1067, %v1066
  %v1081 = vpack.c.bf16 %v1069, %v1068
  %v1082 = vpack.c.bf16 %v1071, %v1070
  %v1083 = vpack.c.bf16 %v1073, %v1072
  %v1084 = vpack.c.bf16 %v1075, %v1074
  %v1085 = vpack.c.bf16 %v1077, %v1076
  %v1102 = vunpack.c.l.b16 %v52
  %v1103 = vunpack.c.l.b16 %v53
  %v1104 = vunpack.c.l.b16 %v54
  %v1105 = vunpack.c.l.b16 %v55
  %v1106 = vunpack.c.l.b16 %v56
  %v1107 = vunpack.c.l.b16 %v57
  %v1108 = vunpack.c.l.b16 %v58
  %v1109 = vunpack.c.l.b16 %v59
  %v1110 = vunpack.c.l.b16 %v60
  %v1111 = vunpack.c.l.b16 %v61
  %v1112 = vunpack.c.l.b16 %v62
  %v1113 = vunpack.c.l.b16 %v63
  %v1114 = vunpack.c.l.b16 %v64
  %v1115 = vunpack.c.l.b16 %v65
  %v1116 = vunpack.c.l.b16 %v66
  %v1117 = vunpack.c.l.b16 %v67
  %v1118 = vpack.c.b16 %v1103, %v1102
  %v1119 = vpack.c.b16 %v1105, %v1104
  %v1120 = vpack.c.b16 %v1107, %v1106
  %v1121 = vpack.c.b16 %v1109, %v1108
  %v1122 = vpack.c.b16 %v1111, %v1110
  %v1123 = vpack.c.b16 %v1113, %v1112
  %v1124 = vpack.c.b16 %v1115, %v1114
  %v1125 = vpack.c.b16 %v1117, %v1116
  %1134 = vmatpush.bf16.msra.mxu0 %v1125
  %1135 = vmatpush.bf16.msra.mxu0 %v1124
  %1136 = vmatpush.bf16.msra.mxu0 %v1123
  %1137 = vmatpush.bf16.msra.mxu0 %v1122
  %1138 = vmatpush.bf16.msra.mxu0 %v1121
  %1139 = vmatpush.bf16.msra.mxu0 %v1120
  %1140 = vmatpush.bf16.msra.mxu0 %v1119
  %1141 = vmatpush.bf16.msra.mxu0 %v1118
  %1142 = vmatmul.bf16.gmra.mxu0 %v1078
  %v1143 = vpop.f32.mrf.mxu0
  %v1144 = vadd.f32 %v104, %v1143
  %v1145 = vpop.f32.mrf.mxu0
  %v1146 = vadd.f32 %v104, %v1145
  %1147 = vmatmul.bf16.gmra.mxu0 %v1079
  %v1148 = vpop.f32.mrf.mxu0
  %v1149 = vadd.f32 %v104, %v1148
  %v1150 = vpop.f32.mrf.mxu0
  %v1151 = vadd.f32 %v104, %v1150
  %1152 = vmatmul.bf16.gmra.mxu0 %v1080
  %v1153 = vpop.f32.mrf.mxu0
  %v1154 = vadd.f32 %v104, %v1153
  %v1155 = vpop.f32.mrf.mxu0
  %v1156 = vadd.f32 %v104, %v1155
  %1157 = vmatmul.bf16.gmra.mxu0 %v1081
  %v1158 = vpop.f32.mrf.mxu0
  %v1159 = vadd.f32 %v104, %v1158
  %v1160 = vpop.f32.mrf.mxu0
  %v1161 = vadd.f32 %v104, %v1160
  %1162 = vmatmul.bf16.gmra.mxu0 %v1082
  %v1163 = vpop.f32.mrf.mxu0
  %v1164 = vadd.f32 %v104, %v1163
  %v1165 = vpop.f32.mrf.mxu0
  %v1166 = vadd.f32 %v104, %v1165
  %1167 = vmatmul.bf16.gmra.mxu0 %v1083
  %v1168 = vpop.f32.mrf.mxu0
  %v1169 = vadd.f32 %v104, %v1168
  %v1170 = vpop.f32.mrf.mxu0
  %v1171 = vadd.f32 %v104, %v1170
  %1172 = vmatmul.bf16.gmra.mxu0 %v1084
  %v1173 = vpop.f32.mrf.mxu0
  %v1174 = vadd.f32 %v104, %v1173
  %v1175 = vpop.f32.mrf.mxu0
  %v1176 = vadd.f32 %v104, %v1175
  %1177 = vmatmul.bf16.gmra.mxu0 %v1085
  %v1178 = vpop.f32.mrf.mxu0
  %v1179 = vadd.f32 %v104, %v1178
  %v1180 = vpop.f32.mrf.mxu0
  %v1181 = vadd.f32 %v104, %v1180
  %1182 = vdwg.mxu0
  %v1183 = vtanh.pop %v1144
  %v1184 = vtanh.pop %v1146
  %v1185 = vtanh.pop %v1149
  %v1186 = vtanh.pop %v1151
  %v1187 = vtanh.pop %v1154
  %v1188 = vtanh.pop %v1156
  %v1189 = vtanh.pop %v1159
  %v1190 = vtanh.pop %v1161
  %v1191 = vtanh.pop %v1164
  %v1192 = vtanh.pop %v1166
  %v1193 = vtanh.pop %v1169
  %v1194 = vtanh.pop %v1171
  %v1195 = vtanh.pop %v1174
  %v1196 = vtanh.pop %v1176
  %v1197 = vtanh.pop %v1179
  %v1198 = vtanh.pop %v1181
  %v1199 = vpack.c.bf16 %v1184, %v1183
  %v1200 = vpack.c.bf16 %v1186, %v1185
  %v1201 = vpack.c.bf16 %v1188, %v1187
  %v1202 = vpack.c.bf16 %v1190, %v1189
  %v1203 = vpack.c.bf16 %v1192, %v1191
  %v1204 = vpack.c.bf16 %v1194, %v1193
  %v1205 = vpack.c.bf16 %v1196, %v1195
  %v1206 = vpack.c.bf16 %v1198, %v1197
  %v1211 = vunpack.c.l.b16 %v68
  %v1212 = vunpack.c.l.b16 %v69
  %v1213 = vunpack.c.l.b16 %v70
  %v1214 = vunpack.c.l.b16 %v71
  %v1215 = vpack.c.b16 %v1212, %v1211
  %v1216 = vpack.c.b16 %v1214, %v1213
  %v1220 = vsel %vm980, %v1199, 0
  %v1223 = vsel %vm980, %v1200, 0
  %v1226 = vsel %vm980, %v1201, 0
  %v1229 = vsel %vm980, %v1202, 0
  %v1232 = vsel %vm980, %v1203, 0
  %v1235 = vsel %vm980, %v1204, 0
  %v1238 = vsel %vm980, %v1205, 0
  %v1241 = vsel %vm980, %v1206, 0
  %1243 = vmatpush.bf16.msra.mxu0 0
  %1244 = vmatpush.bf16.msra.mxu0 0
  %1245 = vmatpush.bf16.msra.mxu0 0
  %1246 = vmatpush.bf16.msra.mxu0 0
  %1247 = vmatpush.bf16.msra.mxu0 0
  %1248 = vmatpush.bf16.msra.mxu0 0
  %1249 = vmatpush.bf16.msra.mxu0 %v1216
  %1250 = vmatpush.bf16.msra.mxu0 %v1215
  %1251 = vmatmul.bf16.gmra.mxu0 %v1220
  %v1252 = vpop.f32.mrf.mxu0
  %v1253 = vadd.f32 %v108, %v1252
  %v1254 = vpop.f32.mrf.mxu0
  %v1255 = vadd.f32 %v108, %v1254
  %1256 = vmatmul.bf16.gmra.mxu0 %v1223
  %v1257 = vpop.f32.mrf.mxu0
  %v1258 = vadd.f32 %v108, %v1257
  %v1259 = vpop.f32.mrf.mxu0
  %v1260 = vadd.f32 %v108, %v1259
  %1261 = vmatmul.bf16.gmra.mxu0 %v1226
  %v1262 = vpop.f32.mrf.mxu0
  %v1263 = vadd.f32 %v108, %v1262
  %v1264 = vpop.f32.mrf.mxu0
  %v1265 = vadd.f32 %v108, %v1264
  %1266 = vmatmul.bf16.gmra.mxu0 %v1229
  %v1267 = vpop.f32.mrf.mxu0
  %v1268 = vadd.f32 %v108, %v1267
  %v1269 = vpop.f32.mrf.mxu0
  %v1270 = vadd.f32 %v108, %v1269
  %1271 = vmatmul.bf16.gmra.mxu0 %v1232
  %v1272 = vpop.f32.mrf.mxu0
  %v1273 = vadd.f32 %v108, %v1272
  %v1274 = vpop.f32.mrf.mxu0
  %v1275 = vadd.f32 %v108, %v1274
  %1276 = vmatmul.bf16.gmra.mxu0 %v1235
  %v1277 = vpop.f32.mrf.mxu0
  %v1278 = vadd.f32 %v108, %v1277
  %v1279 = vpop.f32.mrf.mxu0
  %v1280 = vadd.f32 %v108, %v1279
  %1281 = vmatmul.bf16.gmra.mxu0 %v1238
  %v1282 = vpop.f32.mrf.mxu0
  %v1283 = vadd.f32 %v108, %v1282
  %v1284 = vpop.f32.mrf.mxu0
  %v1285 = vadd.f32 %v108, %v1284
  %1286 = vmatmul.bf16.gmra.mxu0 %v1241
  %v1287 = vpop.f32.mrf.mxu0
  %v1288 = vadd.f32 %v108, %v1287
  %v1289 = vpop.f32.mrf.mxu0
  %v1290 = vadd.f32 %v108, %v1289
  %1291 = vdwg.mxu0
  %vm1292 = vcmask 7168
  %v1293 = vsel %vm1292, %v1253, -inf
  %v1294 = vsel %vm1292, %v1255, -inf
  %v1295 = vsel %vm1292, %v1258, -inf
  %v1296 = vsel %vm1292, %v1260, -inf
  %v1297 = vsel %vm1292, %v1263, -inf
  %v1298 = vmax.f32 %v1293, %v1297
  %v1299 = vsel %vm1292, %v1265, -inf
  %v1300 = vmax.f32 %v1294, %v1299
  %v1301 = vsel %vm1292, %v1268, -inf
  %v1302 = vmax.f32 %v1295, %v1301
  %v1303 = vsel %vm1292, %v1270, -inf
  %v1304 = vmax.f32 %v1296, %v1303
  %v1305 = vsel %vm1292, %v1273, -inf
  %v1306 = vmax.f32 %v1298, %v1305
  %v1307 = vsel %vm1292, %v1275, -inf
  %v1308 = vmax.f32 %v1300, %v1307
  %v1309 = vsel %vm1292, %v1278, -inf
  %v1310 = vmax.f32 %v1302, %v1309
  %v1311 = vsel %vm1292, %v1280, -inf
  %v1312 = vmax.f32 %v1304, %v1311
  %v1313 = vsel %vm1292, %v1283, -inf
  %v1314 = vmax.f32 %v1306, %v1313
  %v1315 = vsel %vm1292, %v1285, -inf
  %v1316 = vmax.f32 %v1308, %v1315
  %v1317 = vsel %vm1292, %v1288, -inf
  %v1318 = vmax.f32 %v1310, %v1317
  %v1319 = vsel %vm1292, %v1290, -inf
  %v1320 = vmax.f32 %v1312, %v1319
  %v1321 = vmax.f32 %v1314, %v1316
  %v1322 = vmax.f32 %v1318, %v1320
  %v1323 = vmax.f32 %v1321, %v1322
  %1324 = vmax.xlane.f32.xlu0 %v1323
  %v1325 = vpop.xlane.xlu0 %1324
  %v1326 = vrot.slane %v1325, 4
  %v1327 = vmax.f32 %v1325, %v1326
  %v1328 = vrot.slane %v1327, 2
  %v1329 = vmax.f32 %v1327, %v1328
  %v1330 = vrot.slane %v1329, 1
  %v1331 = vmax.f32 %v1329, %v1330
  %s1332 = vtos %v1331
  %v1333 = vstv %s1332
  %v1334 = vsub.f32 %v1253, %v1333
  %v1335 = vsub.f32 %v1255, %v1333
  %v1336 = vsub.f32 %v1258, %v1333
  %v1337 = vsub.f32 %v1260, %v1333
  %v1338 = vsub.f32 %v1263, %v1333
  %v1339 = vsub.f32 %v1265, %v1333
  %v1340 = vsub.f32 %v1268, %v1333
  %v1341 = vsub.f32 %v1270, %v1333
  %v1342 = vsub.f32 %v1273, %v1333
  %v1343 = vsub.f32 %v1275, %v1333
  %v1344 = vsub.f32 %v1278, %v1333
  %v1345 = vsub.f32 %v1280, %v1333
  %v1346 = vsub.f32 %v1283, %v1333
  %v1347 = vsub.f32 %v1285, %v1333
  %v1348 = vsub.f32 %v1288, %v1333
  %v1349 = vsub.f32 %v1290, %v1333
  %v1350 = vmul.f32 %v1334, 1.442695
  %v1351 = vpow.pop %v1350
  %v1352 = vmul.f32 %v1335, 1.442695
  %v1353 = vpow.pop %v1352
  %v1354 = vmul.f32 %v1336, 1.442695
  %v1355 = vpow.pop %v1354
  %v1356 = vmul.f32 %v1337, 1.442695
  %v1357 = vpow.pop %v1356
  %v1358 = vmul.f32 %v1338, 1.442695
  %v1359 = vpow.pop %v1358
  %v1360 = vmul.f32 %v1339, 1.442695
  %v1361 = vpow.pop %v1360
  %v1362 = vmul.f32 %v1340, 1.442695
  %v1363 = vpow.pop %v1362
  %v1364 = vmul.f32 %v1341, 1.442695
  %v1365 = vpow.pop %v1364
  %v1366 = vmul.f32 %v1342, 1.442695
  %v1367 = vpow.pop %v1366
  %v1368 = vmul.f32 %v1343, 1.442695
  %v1369 = vpow.pop %v1368
  %v1370 = vmul.f32 %v1344, 1.442695
  %v1371 = vpow.pop %v1370
  %v1372 = vmul.f32 %v1345, 1.442695
  %v1373 = vpow.pop %v1372
  %v1374 = vmul.f32 %v1346, 1.442695
  %v1375 = vpow.pop %v1374
  %v1376 = vmul.f32 %v1347, 1.442695
  %v1377 = vpow.pop %v1376
  %v1378 = vmul.f32 %v1348, 1.442695
  %v1379 = vpow.pop %v1378
  %v1380 = vmul.f32 %v1349, 1.442695
  %v1381 = vpow.pop %v1380
  %1383 = vset.pattern.permute.xlu0 0
  %1384 = vperm.xlu0 %1383, %v1351
  %v1385 = vpop.permute.xlu0 %1384
  %1388 = vset.pattern.permute.xlu0 0
  %1389 = vperm.xlu0 %1388, %v1353
  %v1390 = vpop.permute.xlu0 %1389
  %1393 = vset.pattern.permute.xlu0 0
  %1394 = vperm.xlu0 %1393, %v1355
  %v1395 = vpop.permute.xlu0 %1394
  %1398 = vset.pattern.permute.xlu0 0
  %1399 = vperm.xlu0 %1398, %v1357
  %v1400 = vpop.permute.xlu0 %1399
  %1403 = vset.pattern.permute.xlu0 0
  %1404 = vperm.xlu0 %1403, %v1359
  %v1405 = vpop.permute.xlu0 %1404
  %1408 = vset.pattern.permute.xlu0 0
  %1409 = vperm.xlu0 %1408, %v1361
  %v1410 = vpop.permute.xlu0 %1409
  %1413 = vset.pattern.permute.xlu0 0
  %1414 = vperm.xlu0 %1413, %v1363
  %v1415 = vpop.permute.xlu0 %1414
  %1418 = vset.pattern.permute.xlu0 0
  %1419 = vperm.xlu0 %1418, %v1365
  %v1420 = vpop.permute.xlu0 %1419
  %1423 = vset.pattern.permute.xlu0 0
  %1424 = vperm.xlu0 %1423, %v1367
  %v1425 = vpop.permute.xlu0 %1424
  %1428 = vset.pattern.permute.xlu0 0
  %1429 = vperm.xlu0 %1428, %v1369
  %v1430 = vpop.permute.xlu0 %1429
  %1433 = vset.pattern.permute.xlu0 0
  %1434 = vperm.xlu0 %1433, %v1371
  %v1435 = vpop.permute.xlu0 %1434
  %1438 = vset.pattern.permute.xlu0 0
  %1439 = vperm.xlu0 %1438, %v1373
  %v1440 = vpop.permute.xlu0 %1439
  %1443 = vset.pattern.permute.xlu0 0
  %1444 = vperm.xlu0 %1443, %v1375
  %v1445 = vpop.permute.xlu0 %1444
  %1448 = vset.pattern.permute.xlu0 0
  %1449 = vperm.xlu0 %1448, %v1377
  %v1450 = vpop.permute.xlu0 %1449
  %1453 = vset.pattern.permute.xlu0 0
  %1454 = vperm.xlu0 %1453, %v1379
  %v1455 = vpop.permute.xlu0 %1454
  %1458 = vset.pattern.permute.xlu0 0
  %1459 = vperm.xlu0 %1458, %v1381
  %v1460 = vpop.permute.xlu0 %1459
  %v1462 = vmul.f32 %v1385, %v716
  %v1463 = vmul.f32 %v1390, %v718
  %v1464 = vmul.f32 %v1395, %v721
  %v1465 = vmul.f32 %v1400, %v723
  %v1466 = vmul.f32 %v1405, %v726
  %v1467 = vmul.f32 %v1410, %v728
  %v1468 = vmul.f32 %v1415, %v731
  %v1469 = vmul.f32 %v1420, %v733
  %v1470 = vmul.f32 %v1425, %v736
  %v1471 = vmul.f32 %v1430, %v738
  %v1472 = vmul.f32 %v1435, %v741
  %v1473 = vmul.f32 %v1440, %v743
  %v1474 = vmul.f32 %v1445, %v746
  %v1475 = vmul.f32 %v1450, %v748
  %v1476 = vmul.f32 %v1455, %v751
  %v1477 = vmul.f32 %v1460, %v753
  %1478 = vrot.lane.b32.xlu0 %v1351, 32
  %v1479 = vpop.permute.xlu0 %1478
  %1480 = vrot.lane.b32.xlu0 %v1353, 32
  %v1481 = vpop.permute.xlu0 %1480
  %1482 = vrot.lane.b32.xlu0 %v1355, 32
  %v1483 = vpop.permute.xlu0 %1482
  %1484 = vrot.lane.b32.xlu0 %v1357, 32
  %v1485 = vpop.permute.xlu0 %1484
  %1486 = vrot.lane.b32.xlu0 %v1359, 32
  %v1487 = vpop.permute.xlu0 %1486
  %1488 = vrot.lane.b32.xlu0 %v1361, 32
  %v1489 = vpop.permute.xlu0 %1488
  %1490 = vrot.lane.b32.xlu0 %v1363, 32
  %v1491 = vpop.permute.xlu0 %1490
  %1492 = vrot.lane.b32.xlu0 %v1365, 32
  %v1493 = vpop.permute.xlu0 %1492
  %1494 = vrot.lane.b32.xlu0 %v1367, 32
  %v1495 = vpop.permute.xlu0 %1494
  %1496 = vrot.lane.b32.xlu0 %v1369, 32
  %v1497 = vpop.permute.xlu0 %1496
  %1498 = vrot.lane.b32.xlu0 %v1371, 32
  %v1499 = vpop.permute.xlu0 %1498
  %1500 = vrot.lane.b32.xlu0 %v1373, 32
  %v1501 = vpop.permute.xlu0 %1500
  %1502 = vrot.lane.b32.xlu0 %v1375, 32
  %v1503 = vpop.permute.xlu0 %1502
  %1504 = vrot.lane.b32.xlu0 %v1377, 32
  %v1505 = vpop.permute.xlu0 %1504
  %1506 = vrot.lane.b32.xlu0 %v1379, 32
  %v1507 = vpop.permute.xlu0 %1506
  %1508 = vrot.lane.b32.xlu0 %v1381, 32
  %v1509 = vpop.permute.xlu0 %1508
  %v1526 = vsel %vm980, %v1462, %v1479
  %v1527 = vsel %vm980, %v1463, %v1481
  %v1528 = vsel %vm980, %v1464, %v1483
  %v1529 = vsel %vm980, %v1465, %v1485
  %v1530 = vsel %vm980, %v1466, %v1487
  %v1531 = vsel %vm980, %v1467, %v1489
  %v1532 = vsel %vm980, %v1468, %v1491
  %v1533 = vsel %vm980, %v1469, %v1493
  %v1534 = vsel %vm980, %v1470, %v1495
  %v1535 = vsel %vm980, %v1471, %v1497
  %v1536 = vsel %vm980, %v1472, %v1499
  %v1537 = vsel %vm980, %v1473, %v1501
  %v1538 = vsel %vm980, %v1474, %v1503
  %v1539 = vsel %vm980, %v1475, %v1505
  %v1540 = vsel %vm980, %v1476, %v1507
  %v1541 = vsel %vm980, %v1477, %v1509
  %v1542 = vpack.c.bf16 %v1527, %v1526
  %v1543 = vpack.c.bf16 %v1529, %v1528
  %v1544 = vpack.c.bf16 %v1531, %v1530
  %v1545 = vpack.c.bf16 %v1533, %v1532
  %v1546 = vpack.c.bf16 %v1535, %v1534
  %v1547 = vpack.c.bf16 %v1537, %v1536
  %v1548 = vpack.c.bf16 %v1539, %v1538
  %v1549 = vpack.c.bf16 %v1541, %v1540
  %v1552 = vunpack.c.l.b16 %v100
  %v1553 = vunpack.c.l.b16 %v101
  %v1554 = vpack.c.b16 %v1553, %v1552
  %1556 = vmatpush.bf16.msra.mxu0 %v1549
  %1557 = vmatpush.bf16.msra.mxu0 %v1548
  %1558 = vmatpush.bf16.msra.mxu0 %v1547
  %1559 = vmatpush.bf16.msra.mxu0 %v1546
  %1560 = vmatpush.bf16.msra.mxu0 %v1545
  %1561 = vmatpush.bf16.msra.mxu0 %v1544
  %1562 = vmatpush.bf16.msra.mxu0 %v1543
  %1563 = vmatpush.bf16.msra.mxu0 %v1542
  %1564 = vmatmul.bf16.gmra.mxu0 %v1554
  %v1565 = vpop.f32.mrf.mxu0
  %v1566 = vadd.f32 0.0, %v1565
  %v1567 = vpop.f32.mrf.mxu0
  %v1568 = vadd.f32 0.0, %v1567
  %1569 = vdwg.mxu0
  %v1570 = vrcp.pop %v1566
  %v1571 = vrcp.pop %v1568
  %1573 = vset.pattern.permute.xlu0 32
  %1574 = vperm.xlu0 %1573, %v1570
  %v1575 = vpop.permute.xlu0 %1574
  %1578 = vset.pattern.permute.xlu0 32
  %1579 = vperm.xlu0 %1578, %v1571
  %v1580 = vpop.permute.xlu0 %1579
  %v1582 = vmul.f32 %v1566, %v1575
  %v1583 = vmul.f32 %v1568, %v1580
  %1586 = vrot.lane.b32.xlu0 %v1582, 32
  %v1587 = vpop.permute.xlu0 %1586
  %1588 = vrot.lane.b32.xlu0 %v1583, 32
  %v1589 = vpop.permute.xlu0 %1588
  %1594 = vrot.lane.b32.xlu0 %v622, 64
  %v1595 = vpop.permute.xlu0 %1594
  %1596 = vrot.lane.b32.xlu0 %v623, 64
  %v1597 = vpop.permute.xlu0 %1596
  %v1600 = vsel %vm980, %v622, %v1587
  %v1601 = vsel %vm980, %v623, %v1589
  %v1602 = vsel %vm1061, %v1600, %v1595
  %v1603 = vsel %vm1061, %v1601, %v1597
  %v1604 = vpack.c.bf16 %v1603, %v1602
  %v1617 = vunpack.c.l.b16 %v72
  %v1618 = vunpack.c.l.b16 %v73
  %v1619 = vunpack.c.l.b16 %v74
  %v1620 = vunpack.c.l.b16 %v75
  %v1621 = vunpack.c.l.b16 %v76
  %v1622 = vunpack.c.l.b16 %v77
  %v1623 = vunpack.c.l.b16 %v78
  %v1624 = vunpack.c.l.b16 %v79
  %v1625 = vunpack.c.l.b16 %v80
  %v1626 = vunpack.c.l.b16 %v81
  %v1627 = vunpack.c.l.b16 %v82
  %v1628 = vunpack.c.l.b16 %v83
  %v1629 = vpack.c.b16 %v1618, %v1617
  %v1630 = vpack.c.b16 %v1620, %v1619
  %v1631 = vpack.c.b16 %v1622, %v1621
  %v1632 = vpack.c.b16 %v1624, %v1623
  %v1633 = vpack.c.b16 %v1626, %v1625
  %v1634 = vpack.c.b16 %v1628, %v1627
  %vm1641 = vcmask 785408
  %v1643 = vsel %vm1641, %v1604, 0
  %1645 = vmatpush.bf16.msra.mxu0 0
  %1646 = vmatpush.bf16.msra.mxu0 0
  %1647 = vmatpush.bf16.msra.mxu0 %v1634
  %1648 = vmatpush.bf16.msra.mxu0 %v1633
  %1649 = vmatpush.bf16.msra.mxu0 %v1632
  %1650 = vmatpush.bf16.msra.mxu0 %v1631
  %1651 = vmatpush.bf16.msra.mxu0 %v1630
  %1652 = vmatpush.bf16.msra.mxu0 %v1629
  %1653 = vmatmul.bf16.gmra.mxu0 %v1643
  %v1654 = vpop.f32.mrf.mxu0
  %v1655 = vadd.f32 %v112, %v1654
  %v1656 = vpop.f32.mrf.mxu0
  %v1657 = vadd.f32 %v112, %v1656
  %1658 = vdwg.mxu0
  %v1659 = vmax.f32 %v1655, 0.0
  %v1660 = vmax.f32 %v1657, 0.0
  %v1661 = vpack.c.bf16 %v1660, %v1659
  %1662 = vmatpush.bf16.msra.mxu0 0
  %1663 = vmatpush.bf16.msra.mxu0 0
  %1664 = vmatpush.bf16.msra.mxu0 0
  %1665 = vmatpush.bf16.msra.mxu0 0
  %1666 = vmatpush.bf16.msra.mxu0 0
  %1667 = vmatpush.bf16.msra.mxu0 0
  %1668 = vmatpush.bf16.msra.mxu0 0
  %1669 = vmatpush.bf16.msra.mxu0 %v1661
  %1670 = vmatmul.bf16.gmra.mxu0 %v796
  %v1671 = vpop.f32.mrf.mxu0
  %v1672 = vadd.f32 0.0, %v1671
  %v1673 = vpop.f32.mrf.mxu0
  %v1674 = vadd.f32 0.0, %v1673
  %1675 = vmatmul.bf16.gmra.mxu0 %v799
  %v1676 = vpop.f32.mrf.mxu0
  %v1677 = vadd.f32 0.0, %v1676
  %v1678 = vpop.f32.mrf.mxu0
  %v1679 = vadd.f32 0.0, %v1678
  %1680 = vmatmul.bf16.gmra.mxu0 %v802
  %v1681 = vpop.f32.mrf.mxu0
  %v1682 = vadd.f32 0.0, %v1681
  %v1683 = vpop.f32.mrf.mxu0
  %v1684 = vadd.f32 0.0, %v1683
  %1685 = vmatmul.bf16.gmra.mxu0 %v805
  %v1686 = vpop.f32.mrf.mxu0
  %v1687 = vadd.f32 0.0, %v1686
  %v1688 = vpop.f32.mrf.mxu0
  %v1689 = vadd.f32 0.0, %v1688
  %1690 = vmatmul.bf16.gmra.mxu0 %v808
  %v1691 = vpop.f32.mrf.mxu0
  %v1692 = vadd.f32 0.0, %v1691
  %v1693 = vpop.f32.mrf.mxu0
  %v1694 = vadd.f32 0.0, %v1693
  %1695 = vmatmul.bf16.gmra.mxu0 %v811
  %v1696 = vpop.f32.mrf.mxu0
  %v1697 = vadd.f32 0.0, %v1696
  %v1698 = vpop.f32.mrf.mxu0
  %v1699 = vadd.f32 0.0, %v1698
  %1700 = vmatmul.bf16.gmra.mxu0 %v814
  %v1701 = vpop.f32.mrf.mxu0
  %v1702 = vadd.f32 0.0, %v1701
  %v1703 = vpop.f32.mrf.mxu0
  %v1704 = vadd.f32 0.0, %v1703
  %1705 = vmatmul.bf16.gmra.mxu0 %v817
  %v1706 = vpop.f32.mrf.mxu0
  %v1707 = vadd.f32 0.0, %v1706
  %v1708 = vpop.f32.mrf.mxu0
  %v1709 = vadd.f32 0.0, %v1708
  %1710 = vdwg.mxu0
  %v1711 = vmul.f32 %v716, %v1672
  %v1712 = vmul.f32 %v718, %v1674
  %v1713 = vmul.f32 %v721, %v1677
  %v1714 = vmul.f32 %v723, %v1679
  %v1715 = vmul.f32 %v726, %v1682
  %v1716 = vmul.f32 %v728, %v1684
  %v1717 = vmul.f32 %v731, %v1687
  %v1718 = vmul.f32 %v733, %v1689
  %v1719 = vmul.f32 %v736, %v1692
  %v1720 = vmul.f32 %v738, %v1694
  %v1721 = vmul.f32 %v741, %v1697
  %v1722 = vmul.f32 %v743, %v1699
  %v1723 = vmul.f32 %v746, %v1702
  %v1724 = vmul.f32 %v748, %v1704
  %v1725 = vmul.f32 %v751, %v1707
  %v1726 = vmul.f32 %v753, %v1709
  %v1727 = vsub.f32 %v716, %v1672
  %v1728 = vsub.f32 %v718, %v1674
  %v1729 = vsub.f32 %v721, %v1677
  %v1730 = vsub.f32 %v723, %v1679
  %v1731 = vsub.f32 %v726, %v1682
  %v1732 = vsub.f32 %v728, %v1684
  %v1733 = vsub.f32 %v731, %v1687
  %v1734 = vsub.f32 %v733, %v1689
  %v1735 = vsub.f32 %v736, %v1692
  %v1736 = vsub.f32 %v738, %v1694
  %v1737 = vsub.f32 %v741, %v1697
  %v1738 = vsub.f32 %v743, %v1699
  %v1739 = vsub.f32 %v746, %v1702
  %v1740 = vsub.f32 %v748, %v1704
  %v1741 = vsub.f32 %v751, %v1707
  %v1742 = vsub.f32 %v753, %v1709
  %v1743 = vand.u32 2147483647, %v1727
  %v1744 = vand.u32 2147483647, %v1728
  %v1745 = vand.u32 2147483647, %v1729
  %v1746 = vand.u32 2147483647, %v1730
  %v1747 = vand.u32 2147483647, %v1731
  %v1748 = vand.u32 2147483647, %v1732
  %v1749 = vand.u32 2147483647, %v1733
  %v1750 = vand.u32 2147483647, %v1734
  %v1751 = vand.u32 2147483647, %v1735
  %v1752 = vand.u32 2147483647, %v1736
  %v1753 = vand.u32 2147483647, %v1737
  %v1754 = vand.u32 2147483647, %v1738
  %v1755 = vand.u32 2147483647, %v1739
  %v1756 = vand.u32 2147483647, %v1740
  %v1757 = vand.u32 2147483647, %v1741
  %v1758 = vand.u32 2147483647, %v1742
  %1775 = vrot.lane.b32.xlu0 %v1743, 32
  %v1776 = vpop.permute.xlu0 %1775
  %1777 = vrot.lane.b32.xlu0 %v1744, 32
  %v1778 = vpop.permute.xlu0 %1777
  %1779 = vrot.lane.b32.xlu0 %v1745, 32
  %v1780 = vpop.permute.xlu0 %1779
  %1781 = vrot.lane.b32.xlu0 %v1746, 32
  %v1782 = vpop.permute.xlu0 %1781
  %1783 = vrot.lane.b32.xlu0 %v1747, 32
  %v1784 = vpop.permute.xlu0 %1783
  %1785 = vrot.lane.b32.xlu0 %v1748, 32
  %v1786 = vpop.permute.xlu0 %1785
  %1787 = vrot.lane.b32.xlu0 %v1749, 32
  %v1788 = vpop.permute.xlu0 %1787
  %1789 = vrot.lane.b32.xlu0 %v1750, 32
  %v1790 = vpop.permute.xlu0 %1789
  %1791 = vrot.lane.b32.xlu0 %v1751, 32
  %v1792 = vpop.permute.xlu0 %1791
  %1793 = vrot.lane.b32.xlu0 %v1752, 32
  %v1794 = vpop.permute.xlu0 %1793
  %1795 = vrot.lane.b32.xlu0 %v1753, 32
  %v1796 = vpop.permute.xlu0 %1795
  %1797 = vrot.lane.b32.xlu0 %v1754, 32
  %v1798 = vpop.permute.xlu0 %1797
  %1799 = vrot.lane.b32.xlu0 %v1755, 32
  %v1800 = vpop.permute.xlu0 %1799
  %1801 = vrot.lane.b32.xlu0 %v1756, 32
  %v1802 = vpop.permute.xlu0 %1801
  %1803 = vrot.lane.b32.xlu0 %v1757, 32
  %v1804 = vpop.permute.xlu0 %1803
  %1805 = vrot.lane.b32.xlu0 %v1758, 32
  %v1806 = vpop.permute.xlu0 %1805
  %v1823 = vsel %vm980, %v1711, %v1776
  %v1824 = vsel %vm980, %v1712, %v1778
  %v1825 = vsel %vm980, %v1713, %v1780
  %v1826 = vsel %vm980, %v1714, %v1782
  %v1827 = vsel %vm980, %v1715, %v1784
  %v1828 = vsel %vm980, %v1716, %v1786
  %v1829 = vsel %vm980, %v1717, %v1788
  %v1830 = vsel %vm980, %v1718, %v1790
  %v1831 = vsel %vm980, %v1719, %v1792
  %v1832 = vsel %vm980, %v1720, %v1794
  %v1833 = vsel %vm980, %v1721, %v1796
  %v1834 = vsel %vm980, %v1722, %v1798
  %v1835 = vsel %vm980, %v1723, %v1800
  %v1836 = vsel %vm980, %v1724, %v1802
  %v1837 = vsel %vm980, %v1725, %v1804
  %v1838 = vsel %vm980, %v1726, %v1806
  %1855 = vrot.lane.b32.xlu0 %v1823, 64
  %v1856 = vpop.permute.xlu0 %1855
  %1857 = vrot.lane.b32.xlu0 %v1824, 64
  %v1858 = vpop.permute.xlu0 %1857
  %1859 = vrot.lane.b32.xlu0 %v1825, 64
  %v1860 = vpop.permute.xlu0 %1859
  %1861 = vrot.lane.b32.xlu0 %v1826, 64
  %v1862 = vpop.permute.xlu0 %1861
  %1863 = vrot.lane.b32.xlu0 %v1827, 64
  %v1864 = vpop.permute.xlu0 %1863
  %1865 = vrot.lane.b32.xlu0 %v1828, 64
  %v1866 = vpop.permute.xlu0 %1865
  %1867 = vrot.lane.b32.xlu0 %v1829, 64
  %v1868 = vpop.permute.xlu0 %1867
  %1869 = vrot.lane.b32.xlu0 %v1830, 64
  %v1870 = vpop.permute.xlu0 %1869
  %1871 = vrot.lane.b32.xlu0 %v1831, 64
  %v1872 = vpop.permute.xlu0 %1871
  %1873 = vrot.lane.b32.xlu0 %v1832, 64
  %v1874 = vpop.permute.xlu0 %1873
  %1875 = vrot.lane.b32.xlu0 %v1833, 64
  %v1876 = vpop.permute.xlu0 %1875
  %1877 = vrot.lane.b32.xlu0 %v1834, 64
  %v1878 = vpop.permute.xlu0 %1877
  %1879 = vrot.lane.b32.xlu0 %v1835, 64
  %v1880 = vpop.permute.xlu0 %1879
  %1881 = vrot.lane.b32.xlu0 %v1836, 64
  %v1882 = vpop.permute.xlu0 %1881
  %1883 = vrot.lane.b32.xlu0 %v1837, 64
  %v1884 = vpop.permute.xlu0 %1883
  %1885 = vrot.lane.b32.xlu0 %v1838, 64
  %v1886 = vpop.permute.xlu0 %1885
  %v1903 = vsel %vm1061, %v981, %v1856
  %v1904 = vsel %vm1061, %v982, %v1858
  %v1905 = vsel %vm1061, %v983, %v1860
  %v1906 = vsel %vm1061, %v984, %v1862
  %v1907 = vsel %vm1061, %v985, %v1864
  %v1908 = vsel %vm1061, %v986, %v1866
  %v1909 = vsel %vm1061, %v987, %v1868
  %v1910 = vsel %vm1061, %v988, %v1870
  %v1911 = vsel %vm1061, %v989, %v1872
  %v1912 = vsel %vm1061, %v990, %v1874
  %v1913 = vsel %vm1061, %v991, %v1876
  %v1914 = vsel %vm1061, %v992, %v1878
  %v1915 = vsel %vm1061, %v993, %v1880
  %v1916 = vsel %vm1061, %v994, %v1882
  %v1917 = vsel %vm1061, %v995, %v1884
  %v1918 = vsel %vm1061, %v996, %v1886
  %v1919 = vpack.c.bf16 %v1904, %v1903
  %v1920 = vpack.c.bf16 %v1906, %v1905
  %v1921 = vpack.c.bf16 %v1908, %v1907
  %v1922 = vpack.c.bf16 %v1910, %v1909
  %v1923 = vpack.c.bf16 %v1912, %v1911
  %v1924 = vpack.c.bf16 %v1914, %v1913
  %v1925 = vpack.c.bf16 %v1916, %v1915
  %v1926 = vpack.c.bf16 %v1918, %v1917
  %1927 = vmatpush.bf16.msra.mxu0 %v1125
  %1928 = vmatpush.bf16.msra.mxu0 %v1124
  %1929 = vmatpush.bf16.msra.mxu0 %v1123
  %1930 = vmatpush.bf16.msra.mxu0 %v1122
  %1931 = vmatpush.bf16.msra.mxu0 %v1121
  %1932 = vmatpush.bf16.msra.mxu0 %v1120
  %1933 = vmatpush.bf16.msra.mxu0 %v1119
  %1934 = vmatpush.bf16.msra.mxu0 %v1118
  %1935 = vmatmul.bf16.gmra.mxu0 %v1919
  %v1936 = vpop.f32.mrf.mxu0
  %v1937 = vadd.f32 %v104, %v1936
  %v1938 = vpop.f32.mrf.mxu0
  %v1939 = vadd.f32 %v104, %v1938
  %1940 = vmatmul.bf16.gmra.mxu0 %v1920
  %v1941 = vpop.f32.mrf.mxu0
  %v1942 = vadd.f32 %v104, %v1941
  %v1943 = vpop.f32.mrf.mxu0
  %v1944 = vadd.f32 %v104, %v1943
  %1945 = vmatmul.bf16.gmra.mxu0 %v1921
  %v1946 = vpop.f32.mrf.mxu0
  %v1947 = vadd.f32 %v104, %v1946
  %v1948 = vpop.f32.mrf.mxu0
  %v1949 = vadd.f32 %v104, %v1948
  %1950 = vmatmul.bf16.gmra.mxu0 %v1922
  %v1951 = vpop.f32.mrf.mxu0
  %v1952 = vadd.f32 %v104, %v1951
  %v1953 = vpop.f32.mrf.mxu0
  %v1954 = vadd.f32 %v104, %v1953
  %1955 = vmatmul.bf16.gmra.mxu0 %v1923
  %v1956 = vpop.f32.mrf.mxu0
  %v1957 = vadd.f32 %v104, %v1956
  %v1958 = vpop.f32.mrf.mxu0
  %v1959 = vadd.f32 %v104, %v1958
  %1960 = vmatmul.bf16.gmra.mxu0 %v1924
  %v1961 = vpop.f32.mrf.mxu0
  %v1962 = vadd.f32 %v104, %v1961
  %v1963 = vpop.f32.mrf.mxu0
  %v1964 = vadd.f32 %v104, %v1963
  %1965 = vmatmul.bf16.gmra.mxu0 %v1925
  %v1966 = vpop.f32.mrf.mxu0
  %v1967 = vadd.f32 %v104, %v1966
  %v1968 = vpop.f32.mrf.mxu0
  %v1969 = vadd.f32 %v104, %v1968
  %1970 = vmatmul.bf16.gmra.mxu0 %v1926
  %v1971 = vpop.f32.mrf.mxu0
  %v1972 = vadd.f32 %v104, %v1971
  %v1973 = vpop.f32.mrf.mxu0
  %v1974 = vadd.f32 %v104, %v1973
  %1975 = vdwg.mxu0
  %v1976 = vtanh.pop %v1937
  %v1977 = vtanh.pop %v1939
  %v1978 = vtanh.pop %v1942
  %v1979 = vtanh.pop %v1944
  %v1980 = vtanh.pop %v1947
  %v1981 = vtanh.pop %v1949
  %v1982 = vtanh.pop %v1952
  %v1983 = vtanh.pop %v1954
  %v1984 = vtanh.pop %v1957
  %v1985 = vtanh.pop %v1959
  %v1986 = vtanh.pop %v1962
  %v1987 = vtanh.pop %v1964
  %v1988 = vtanh.pop %v1967
  %v1989 = vtanh.pop %v1969
  %v1990 = vtanh.pop %v1972
  %v1991 = vtanh.pop %v1974
  %v1992 = vpack.c.bf16 %v1977, %v1976
  %v1993 = vpack.c.bf16 %v1979, %v1978
  %v1994 = vpack.c.bf16 %v1981, %v1980
  %v1995 = vpack.c.bf16 %v1983, %v1982
  %v1996 = vpack.c.bf16 %v1985, %v1984
  %v1997 = vpack.c.bf16 %v1987, %v1986
  %v1998 = vpack.c.bf16 %v1989, %v1988
  %v1999 = vpack.c.bf16 %v1991, %v1990
  %v2001 = vsel %vm980, %v1992, 0
  %v2004 = vsel %vm980, %v1993, 0
  %v2007 = vsel %vm980, %v1994, 0
  %v2010 = vsel %vm980, %v1995, 0
  %v2013 = vsel %vm980, %v1996, 0
  %v2016 = vsel %vm980, %v1997, 0
  %v2019 = vsel %vm980, %v1998, 0
  %v2022 = vsel %vm980, %v1999, 0
  %2024 = vmatpush.bf16.msra.mxu0 0
  %2025 = vmatpush.bf16.msra.mxu0 0
  %2026 = vmatpush.bf16.msra.mxu0 0
  %2027 = vmatpush.bf16.msra.mxu0 0
  %2028 = vmatpush.bf16.msra.mxu0 0
  %2029 = vmatpush.bf16.msra.mxu0 0
  %2030 = vmatpush.bf16.msra.mxu0 %v1216
  %2031 = vmatpush.bf16.msra.mxu0 %v1215
  %2032 = vmatmul.bf16.gmra.mxu0 %v2001
  %v2033 = vpop.f32.mrf.mxu0
  %v2034 = vadd.f32 %v108, %v2033
  %v2035 = vpop.f32.mrf.mxu0
  %v2036 = vadd.f32 %v108, %v2035
  %2037 = vmatmul.bf16.gmra.mxu0 %v2004
  %v2038 = vpop.f32.mrf.mxu0
  %v2039 = vadd.f32 %v108, %v2038
  %v2040 = vpop.f32.mrf.mxu0
  %v2041 = vadd.f32 %v108, %v2040
  %2042 = vmatmul.bf16.gmra.mxu0 %v2007
  %v2043 = vpop.f32.mrf.mxu0
  %v2044 = vadd.f32 %v108, %v2043
  %v2045 = vpop.f32.mrf.mxu0
  %v2046 = vadd.f32 %v108, %v2045
  %2047 = vmatmul.bf16.gmra.mxu0 %v2010
  %v2048 = vpop.f32.mrf.mxu0
  %v2049 = vadd.f32 %v108, %v2048
  %v2050 = vpop.f32.mrf.mxu0
  %v2051 = vadd.f32 %v108, %v2050
  %2052 = vmatmul.bf16.gmra.mxu0 %v2013
  %v2053 = vpop.f32.mrf.mxu0
  %v2054 = vadd.f32 %v108, %v2053
  %v2055 = vpop.f32.mrf.mxu0
  %v2056 = vadd.f32 %v108, %v2055
  %2057 = vmatmul.bf16.gmra.mxu0 %v2016
  %v2058 = vpop.f32.mrf.mxu0
  %v2059 = vadd.f32 %v108, %v2058
  %v2060 = vpop.f32.mrf.mxu0
  %v2061 = vadd.f32 %v108, %v2060
  %2062 = vmatmul.bf16.gmra.mxu0 %v2019
  %v2063 = vpop.f32.mrf.mxu0
  %v2064 = vadd.f32 %v108, %v2063
  %v2065 = vpop.f32.mrf.mxu0
  %v2066 = vadd.f32 %v108, %v2065
  %2067 = vmatmul.bf16.gmra.mxu0 %v2022
  %v2068 = vpop.f32.mrf.mxu0
  %v2069 = vadd.f32 %v108, %v2068
  %v2070 = vpop.f32.mrf.mxu0
  %v2071 = vadd.f32 %v108, %v2070
  %2072 = vdwg.mxu0
  %v2073 = vsel %vm1292, %v2034, -inf
  %v2074 = vsel %vm1292, %v2036, -inf
  %v2075 = vsel %vm1292, %v2039, -inf
  %v2076 = vsel %vm1292, %v2041, -inf
  %v2077 = vsel %vm1292, %v2044, -inf
  %v2078 = vmax.f32 %v2073, %v2077
  %v2079 = vsel %vm1292, %v2046, -inf
  %v2080 = vmax.f32 %v2074, %v2079
  %v2081 = vsel %vm1292, %v2049, -inf
  %v2082 = vmax.f32 %v2075, %v2081
  %v2083 = vsel %vm1292, %v2051, -inf
  %v2084 = vmax.f32 %v2076, %v2083
  %v2085 = vsel %vm1292, %v2054, -inf
  %v2086 = vmax.f32 %v2078, %v2085
  %v2087 = vsel %vm1292, %v2056, -inf
  %v2088 = vmax.f32 %v2080, %v2087
  %v2089 = vsel %vm1292, %v2059, -inf
  %v2090 = vmax.f32 %v2082, %v2089
  %v2091 = vsel %vm1292, %v2061, -inf
  %v2092 = vmax.f32 %v2084, %v2091
  %v2093 = vsel %vm1292, %v2064, -inf
  %v2094 = vmax.f32 %v2086, %v2093
  %v2095 = vsel %vm1292, %v2066, -inf
  %v2096 = vmax.f32 %v2088, %v2095
  %v2097 = vsel %vm1292, %v2069, -inf
  %v2098 = vmax.f32 %v2090, %v2097
  %v2099 = vsel %vm1292, %v2071, -inf
  %v2100 = vmax.f32 %v2092, %v2099
  %v2101 = vmax.f32 %v2094, %v2096
  %v2102 = vmax.f32 %v2098, %v2100
  %v2103 = vmax.f32 %v2101, %v2102
  %2104 = vmax.xlane.f32.xlu0 %v2103
  %v2105 = vpop.xlane.xlu0 %2104
  %v2106 = vrot.slane %v2105, 4
  %v2107 = vmax.f32 %v2105, %v2106
  %v2108 = vrot.slane %v2107, 2
  %v2109 = vmax.f32 %v2107, %v2108
  %v2110 = vrot.slane %v2109, 1
  %v2111 = vmax.f32 %v2109, %v2110
  %s2112 = vtos %v2111
  %v2113 = vstv %s2112
  %v2114 = vsub.f32 %v2034, %v2113
  %v2115 = vsub.f32 %v2036, %v2113
  %v2116 = vsub.f32 %v2039, %v2113
  %v2117 = vsub.f32 %v2041, %v2113
  %v2118 = vsub.f32 %v2044, %v2113
  %v2119 = vsub.f32 %v2046, %v2113
  %v2120 = vsub.f32 %v2049, %v2113
  %v2121 = vsub.f32 %v2051, %v2113
  %v2122 = vsub.f32 %v2054, %v2113
  %v2123 = vsub.f32 %v2056, %v2113
  %v2124 = vsub.f32 %v2059, %v2113
  %v2125 = vsub.f32 %v2061, %v2113
  %v2126 = vsub.f32 %v2064, %v2113
  %v2127 = vsub.f32 %v2066, %v2113
  %v2128 = vsub.f32 %v2069, %v2113
  %v2129 = vsub.f32 %v2071, %v2113
  %v2130 = vmul.f32 %v2114, 1.442695
  %v2131 = vpow.pop %v2130
  %v2132 = vmul.f32 %v2115, 1.442695
  %v2133 = vpow.pop %v2132
  %v2134 = vmul.f32 %v2116, 1.442695
  %v2135 = vpow.pop %v2134
  %v2136 = vmul.f32 %v2117, 1.442695
  %v2137 = vpow.pop %v2136
  %v2138 = vmul.f32 %v2118, 1.442695
  %v2139 = vpow.pop %v2138
  %v2140 = vmul.f32 %v2119, 1.442695
  %v2141 = vpow.pop %v2140
  %v2142 = vmul.f32 %v2120, 1.442695
  %v2143 = vpow.pop %v2142
  %v2144 = vmul.f32 %v2121, 1.442695
  %v2145 = vpow.pop %v2144
  %v2146 = vmul.f32 %v2122, 1.442695
  %v2147 = vpow.pop %v2146
  %v2148 = vmul.f32 %v2123, 1.442695
  %v2149 = vpow.pop %v2148
  %v2150 = vmul.f32 %v2124, 1.442695
  %v2151 = vpow.pop %v2150
  %v2152 = vmul.f32 %v2125, 1.442695
  %v2153 = vpow.pop %v2152
  %v2154 = vmul.f32 %v2126, 1.442695
  %v2155 = vpow.pop %v2154
  %v2156 = vmul.f32 %v2127, 1.442695
  %v2157 = vpow.pop %v2156
  %v2158 = vmul.f32 %v2128, 1.442695
  %v2159 = vpow.pop %v2158
  %v2160 = vmul.f32 %v2129, 1.442695
  %v2161 = vpow.pop %v2160
  %2163 = vset.pattern.permute.xlu0 0
  %2164 = vperm.xlu0 %2163, %v2131
  %v2165 = vpop.permute.xlu0 %2164
  %2168 = vset.pattern.permute.xlu0 0
  %2169 = vperm.xlu0 %2168, %v2133
  %v2170 = vpop.permute.xlu0 %2169
  %2173 = vset.pattern.permute.xlu0 0
  %2174 = vperm.xlu0 %2173, %v2135
  %v2175 = vpop.permute.xlu0 %2174
  %2178 = vset.pattern.permute.xlu0 0
  %2179 = vperm.xlu0 %2178, %v2137
  %v2180 = vpop.permute.xlu0 %2179
  %2183 = vset.pattern.permute.xlu0 0
  %2184 = vperm.xlu0 %2183, %v2139
  %v2185 = vpop.permute.xlu0 %2184
  %2188 = vset.pattern.permute.xlu0 0
  %2189 = vperm.xlu0 %2188, %v2141
  %v2190 = vpop.permute.xlu0 %2189
  %2193 = vset.pattern.permute.xlu0 0
  %2194 = vperm.xlu0 %2193, %v2143
  %v2195 = vpop.permute.xlu0 %2194
  %2198 = vset.pattern.permute.xlu0 0
  %2199 = vperm.xlu0 %2198, %v2145
  %v2200 = vpop.permute.xlu0 %2199
  %2203 = vset.pattern.permute.xlu0 0
  %2204 = vperm.xlu0 %2203, %v2147
  %v2205 = vpop.permute.xlu0 %2204
  %2208 = vset.pattern.permute.xlu0 0
  %2209 = vperm.xlu0 %2208, %v2149
  %v2210 = vpop.permute.xlu0 %2209
  %2213 = vset.pattern.permute.xlu0 0
  %2214 = vperm.xlu0 %2213, %v2151
  %v2215 = vpop.permute.xlu0 %2214
  %2218 = vset.pattern.permute.xlu0 0
  %2219 = vperm.xlu0 %2218, %v2153
  %v2220 = vpop.permute.xlu0 %2219
  %2223 = vset.pattern.permute.xlu0 0
  %2224 = vperm.xlu0 %2223, %v2155
  %v2225 = vpop.permute.xlu0 %2224
  %2228 = vset.pattern.permute.xlu0 0
  %2229 = vperm.xlu0 %2228, %v2157
  %v2230 = vpop.permute.xlu0 %2229
  %2233 = vset.pattern.permute.xlu0 0
  %2234 = vperm.xlu0 %2233, %v2159
  %v2235 = vpop.permute.xlu0 %2234
  %2238 = vset.pattern.permute.xlu0 0
  %2239 = vperm.xlu0 %2238, %v2161
  %v2240 = vpop.permute.xlu0 %2239
  %v2242 = vmul.f32 %v2165, %v716
  %v2243 = vmul.f32 %v2170, %v718
  %v2244 = vmul.f32 %v2175, %v721
  %v2245 = vmul.f32 %v2180, %v723
  %v2246 = vmul.f32 %v2185, %v726
  %v2247 = vmul.f32 %v2190, %v728
  %v2248 = vmul.f32 %v2195, %v731
  %v2249 = vmul.f32 %v2200, %v733
  %v2250 = vmul.f32 %v2205, %v736
  %v2251 = vmul.f32 %v2210, %v738
  %v2252 = vmul.f32 %v2215, %v741
  %v2253 = vmul.f32 %v2220, %v743
  %v2254 = vmul.f32 %v2225, %v746
  %v2255 = vmul.f32 %v2230, %v748
  %v2256 = vmul.f32 %v2235, %v751
  %v2257 = vmul.f32 %v2240, %v753
  %2258 = vrot.lane.b32.xlu0 %v2131, 32
  %v2259 = vpop.permute.xlu0 %2258
  %2260 = vrot.lane.b32.xlu0 %v2133, 32
  %v2261 = vpop.permute.xlu0 %2260
  %2262 = vrot.lane.b32.xlu0 %v2135, 32
  %v2263 = vpop.permute.xlu0 %2262
  %2264 = vrot.lane.b32.xlu0 %v2137, 32
  %v2265 = vpop.permute.xlu0 %2264
  %2266 = vrot.lane.b32.xlu0 %v2139, 32
  %v2267 = vpop.permute.xlu0 %2266
  %2268 = vrot.lane.b32.xlu0 %v2141, 32
  %v2269 = vpop.permute.xlu0 %2268
  %2270 = vrot.lane.b32.xlu0 %v2143, 32
  %v2271 = vpop.permute.xlu0 %2270
  %2272 = vrot.lane.b32.xlu0 %v2145, 32
  %v2273 = vpop.permute.xlu0 %2272
  %2274 = vrot.lane.b32.xlu0 %v2147, 32
  %v2275 = vpop.permute.xlu0 %2274
  %2276 = vrot.lane.b32.xlu0 %v2149, 32
  %v2277 = vpop.permute.xlu0 %2276
  %2278 = vrot.lane.b32.xlu0 %v2151, 32
  %v2279 = vpop.permute.xlu0 %2278
  %2280 = vrot.lane.b32.xlu0 %v2153, 32
  %v2281 = vpop.permute.xlu0 %2280
  %2282 = vrot.lane.b32.xlu0 %v2155, 32
  %v2283 = vpop.permute.xlu0 %2282
  %2284 = vrot.lane.b32.xlu0 %v2157, 32
  %v2285 = vpop.permute.xlu0 %2284
  %2286 = vrot.lane.b32.xlu0 %v2159, 32
  %v2287 = vpop.permute.xlu0 %2286
  %2288 = vrot.lane.b32.xlu0 %v2161, 32
  %v2289 = vpop.permute.xlu0 %2288
  %v2306 = vsel %vm980, %v2242, %v2259
  %v2307 = vsel %vm980, %v2243, %v2261
  %v2308 = vsel %vm980, %v2244, %v2263
  %v2309 = vsel %vm980, %v2245, %v2265
  %v2310 = vsel %vm980, %v2246, %v2267
  %v2311 = vsel %vm980, %v2247, %v2269
  %v2312 = vsel %vm980, %v2248, %v2271
  %v2313 = vsel %vm980, %v2249, %v2273
  %v2314 = vsel %vm980, %v2250, %v2275
  %v2315 = vsel %vm980, %v2251, %v2277
  %v2316 = vsel %vm980, %v2252, %v2279
  %v2317 = vsel %vm980, %v2253, %v2281
  %v2318 = vsel %vm980, %v2254, %v2283
  %v2319 = vsel %vm980, %v2255, %v2285
  %v2320 = vsel %vm980, %v2256, %v2287
  %v2321 = vsel %vm980, %v2257, %v2289
  %v2322 = vpack.c.bf16 %v2307, %v2306
  %v2323 = vpack.c.bf16 %v2309, %v2308
  %v2324 = vpack.c.bf16 %v2311, %v2310
  %v2325 = vpack.c.bf16 %v2313, %v2312
  %v2326 = vpack.c.bf16 %v2315, %v2314
  %v2327 = vpack.c.bf16 %v2317, %v2316
  %v2328 = vpack.c.bf16 %v2319, %v2318
  %v2329 = vpack.c.bf16 %v2321, %v2320
  %2330 = vmatpush.bf16.msra.mxu0 %v2329
  %2331 = vmatpush.bf16.msra.mxu0 %v2328
  %2332 = vmatpush.bf16.msra.mxu0 %v2327
  %2333 = vmatpush.bf16.msra.mxu0 %v2326
  %2334 = vmatpush.bf16.msra.mxu0 %v2325
  %2335 = vmatpush.bf16.msra.mxu0 %v2324
  %2336 = vmatpush.bf16.msra.mxu0 %v2323
  %2337 = vmatpush.bf16.msra.mxu0 %v2322
  %2338 = vmatmul.bf16.gmra.mxu0 %v1554
  %v2339 = vpop.f32.mrf.mxu0
  %v2340 = vadd.f32 0.0, %v2339
  %v2341 = vpop.f32.mrf.mxu0
  %v2342 = vadd.f32 0.0, %v2341
  %2343 = vdwg.mxu0
  %v2344 = vrcp.pop %v2340
  %v2345 = vrcp.pop %v2342
  %2347 = vset.pattern.permute.xlu0 32
  %2348 = vperm.xlu0 %2347, %v2344
  %v2349 = vpop.permute.xlu0 %2348
  %2352 = vset.pattern.permute.xlu0 32
  %2353 = vperm.xlu0 %2352, %v2345
  %v2354 = vpop.permute.xlu0 %2353
  %v2356 = vmul.f32 %v2340, %v2349
  %v2357 = vmul.f32 %v2342, %v2354
  %2360 = vrot.lane.b32.xlu0 %v2356, 32
  %v2361 = vpop.permute.xlu0 %2360
  %2362 = vrot.lane.b32.xlu0 %v2357, 32
  %v2363 = vpop.permute.xlu0 %2362
  %v2366 = vsel %vm980, %v1659, %v2361
  %v2367 = vsel %vm980, %v1660, %v2363
  %v2368 = vsel %vm1061, %v2366, %v1595
  %v2369 = vsel %vm1061, %v2367, %v1597
  %v2370 = vpack.c.bf16 %v2369, %v2368
  %v2372 = vsel %vm1641, %v2370, 0
  %2374 = vmatpush.bf16.msra.mxu0 0
  %2375 = vmatpush.bf16.msra.mxu0 0
  %2376 = vmatpush.bf16.msra.mxu0 %v1634
  %2377 = vmatpush.bf16.msra.mxu0 %v1633
  %2378 = vmatpush.bf16.msra.mxu0 %v1632
  %2379 = vmatpush.bf16.msra.mxu0 %v1631
  %2380 = vmatpush.bf16.msra.mxu0 %v1630
  %2381 = vmatpush.bf16.msra.mxu0 %v1629
  %2382 = vmatmul.bf16.gmra.mxu0 %v2372
  %v2383 = vpop.f32.mrf.mxu0
  %v2384 = vadd.f32 %v112, %v2383
  %v2385 = vpop.f32.mrf.mxu0
  %v2386 = vadd.f32 %v112, %v2385
  %2387 = vdwg.mxu0
  %v2388 = vmax.f32 %v2384, 0.0
  %v2389 = vmax.f32 %v2386, 0.0
  %v2390 = vpack.c.bf16 %v2389, %v2388
  %2391 = vmatpush.bf16.msra.mxu0 0
  %2392 = vmatpush.bf16.msra.mxu0 0
  %2393 = vmatpush.bf16.msra.mxu0 0
  %2394 = vmatpush.bf16.msra.mxu0 0
  %2395 = vmatpush.bf16.msra.mxu0 0
  %2396 = vmatpush.bf16.msra.mxu0 0
  %2397 = vmatpush.bf16.msra.mxu0 0
  %2398 = vmatpush.bf16.msra.mxu0 %v2390
  %2399 = vmatmul.bf16.gmra.mxu0 %v796
  %v2400 = vpop.f32.mrf.mxu0
  %v2401 = vadd.f32 0.0, %v2400
  %v2402 = vpop.f32.mrf.mxu0
  %v2403 = vadd.f32 0.0, %v2402
  %2404 = vmatmul.bf16.gmra.mxu0 %v799
  %v2405 = vpop.f32.mrf.mxu0
  %v2406 = vadd.f32 0.0, %v2405
  %v2407 = vpop.f32.mrf.mxu0
  %v2408 = vadd.f32 0.0, %v2407
  %2409 = vmatmul.bf16.gmra.mxu0 %v802
  %v2410 = vpop.f32.mrf.mxu0
  %v2411 = vadd.f32 0.0, %v2410
  %v2412 = vpop.f32.mrf.mxu0
  %v2413 = vadd.f32 0.0, %v2412
  %2414 = vmatmul.bf16.gmra.mxu0 %v805
  %v2415 = vpop.f32.mrf.mxu0
  %v2416 = vadd.f32 0.0, %v2415
  %v2417 = vpop.f32.mrf.mxu0
  %v2418 = vadd.f32 0.0, %v2417
  %2419 = vmatmul.bf16.gmra.mxu0 %v808
  %v2420 = vpop.f32.mrf.mxu0
  %v2421 = vadd.f32 0.0, %v2420
  %v2422 = vpop.f32.mrf.mxu0
  %v2423 = vadd.f32 0.0, %v2422
  %2424 = vmatmul.bf16.gmra.mxu0 %v811
  %v2425 = vpop.f32.mrf.mxu0
  %v2426 = vadd.f32 0.0, %v2425
  %v2427 = vpop.f32.mrf.mxu0
  %v2428 = vadd.f32 0.0, %v2427
  %2429 = vmatmul.bf16.gmra.mxu0 %v814
  %v2430 = vpop.f32.mrf.mxu0
  %v2431 = vadd.f32 0.0, %v2430
  %v2432 = vpop.f32.mrf.mxu0
  %v2433 = vadd.f32 0.0, %v2432
  %2434 = vmatmul.bf16.gmra.mxu0 %v817
  %v2435 = vpop.f32.mrf.mxu0
  %v2436 = vadd.f32 0.0, %v2435
  %v2437 = vpop.f32.mrf.mxu0
  %v2438 = vadd.f32 0.0, %v2437
  %2439 = vdwg.mxu0
  %v2440 = vmul.f32 %v716, %v2401
  %v2441 = vmul.f32 %v718, %v2403
  %v2442 = vmul.f32 %v721, %v2406
  %v2443 = vmul.f32 %v723, %v2408
  %v2444 = vmul.f32 %v726, %v2411
  %v2445 = vmul.f32 %v728, %v2413
  %v2446 = vmul.f32 %v731, %v2416
  %v2447 = vmul.f32 %v733, %v2418
  %v2448 = vmul.f32 %v736, %v2421
  %v2449 = vmul.f32 %v738, %v2423
  %v2450 = vmul.f32 %v741, %v2426
  %v2451 = vmul.f32 %v743, %v2428
  %v2452 = vmul.f32 %v746, %v2431
  %v2453 = vmul.f32 %v748, %v2433
  %v2454 = vmul.f32 %v751, %v2436
  %v2455 = vmul.f32 %v753, %v2438
  %v2456 = vsub.f32 %v716, %v2401
  %v2457 = vsub.f32 %v718, %v2403
  %v2458 = vsub.f32 %v721, %v2406
  %v2459 = vsub.f32 %v723, %v2408
  %v2460 = vsub.f32 %v726, %v2411
  %v2461 = vsub.f32 %v728, %v2413
  %v2462 = vsub.f32 %v731, %v2416
  %v2463 = vsub.f32 %v733, %v2418
  %v2464 = vsub.f32 %v736, %v2421
  %v2465 = vsub.f32 %v738, %v2423
  %v2466 = vsub.f32 %v741, %v2426
  %v2467 = vsub.f32 %v743, %v2428
  %v2468 = vsub.f32 %v746, %v2431
  %v2469 = vsub.f32 %v748, %v2433
  %v2470 = vsub.f32 %v751, %v2436
  %v2471 = vsub.f32 %v753, %v2438
  %v2472 = vand.u32 2147483647, %v2456
  %v2473 = vand.u32 2147483647, %v2457
  %v2474 = vand.u32 2147483647, %v2458
  %v2475 = vand.u32 2147483647, %v2459
  %v2476 = vand.u32 2147483647, %v2460
  %v2477 = vand.u32 2147483647, %v2461
  %v2478 = vand.u32 2147483647, %v2462
  %v2479 = vand.u32 2147483647, %v2463
  %v2480 = vand.u32 2147483647, %v2464
  %v2481 = vand.u32 2147483647, %v2465
  %v2482 = vand.u32 2147483647, %v2466
  %v2483 = vand.u32 2147483647, %v2467
  %v2484 = vand.u32 2147483647, %v2468
  %v2485 = vand.u32 2147483647, %v2469
  %v2486 = vand.u32 2147483647, %v2470
  %v2487 = vand.u32 2147483647, %v2471
  %2504 = vrot.lane.b32.xlu0 %v2472, 32
  %v2505 = vpop.permute.xlu0 %2504
  %2506 = vrot.lane.b32.xlu0 %v2473, 32
  %v2507 = vpop.permute.xlu0 %2506
  %2508 = vrot.lane.b32.xlu0 %v2474, 32
  %v2509 = vpop.permute.xlu0 %2508
  %2510 = vrot.lane.b32.xlu0 %v2475, 32
  %v2511 = vpop.permute.xlu0 %2510
  %2512 = vrot.lane.b32.xlu0 %v2476, 32
  %v2513 = vpop.permute.xlu0 %2512
  %2514 = vrot.lane.b32.xlu0 %v2477, 32
  %v2515 = vpop.permute.xlu0 %2514
  %2516 = vrot.lane.b32.xlu0 %v2478, 32
  %v2517 = vpop.permute.xlu0 %2516
  %2518 = vrot.lane.b32.xlu0 %v2479, 32
  %v2519 = vpop.permute.xlu0 %2518
  %2520 = vrot.lane.b32.xlu0 %v2480, 32
  %v2521 = vpop.permute.xlu0 %2520
  %2522 = vrot.lane.b32.xlu0 %v2481, 32
  %v2523 = vpop.permute.xlu0 %2522
  %2524 = vrot.lane.b32.xlu0 %v2482, 32
  %v2525 = vpop.permute.xlu0 %2524
  %2526 = vrot.lane.b32.xlu0 %v2483, 32
  %v2527 = vpop.permute.xlu0 %2526
  %2528 = vrot.lane.b32.xlu0 %v2484, 32
  %v2529 = vpop.permute.xlu0 %2528
  %2530 = vrot.lane.b32.xlu0 %v2485, 32
  %v2531 = vpop.permute.xlu0 %2530
  %2532 = vrot.lane.b32.xlu0 %v2486, 32
  %v2533 = vpop.permute.xlu0 %2532
  %2534 = vrot.lane.b32.xlu0 %v2487, 32
  %v2535 = vpop.permute.xlu0 %2534
  %v2552 = vsel %vm980, %v2440, %v2505
  %v2553 = vsel %vm980, %v2441, %v2507
  %v2554 = vsel %vm980, %v2442, %v2509
  %v2555 = vsel %vm980, %v2443, %v2511
  %v2556 = vsel %vm980, %v2444, %v2513
  %v2557 = vsel %vm980, %v2445, %v2515
  %v2558 = vsel %vm980, %v2446, %v2517
  %v2559 = vsel %vm980, %v2447, %v2519
  %v2560 = vsel %vm980, %v2448, %v2521
  %v2561 = vsel %vm980, %v2449, %v2523
  %v2562 = vsel %vm980, %v2450, %v2525
  %v2563 = vsel %vm980, %v2451, %v2527
  %v2564 = vsel %vm980, %v2452, %v2529
  %v2565 = vsel %vm980, %v2453, %v2531
  %v2566 = vsel %vm980, %v2454, %v2533
  %v2567 = vsel %vm980, %v2455, %v2535
  %2584 = vrot.lane.b32.xlu0 %v2552, 64
  %v2585 = vpop.permute.xlu0 %2584
  %2586 = vrot.lane.b32.xlu0 %v2553, 64
  %v2587 = vpop.permute.xlu0 %2586
  %2588 = vrot.lane.b32.xlu0 %v2554, 64
  %v2589 = vpop.permute.xlu0 %2588
  %2590 = vrot.lane.b32.xlu0 %v2555, 64
  %v2591 = vpop.permute.xlu0 %2590
  %2592 = vrot.lane.b32.xlu0 %v2556, 64
  %v2593 = vpop.permute.xlu0 %2592
  %2594 = vrot.lane.b32.xlu0 %v2557, 64
  %v2595 = vpop.permute.xlu0 %2594
  %2596 = vrot.lane.b32.xlu0 %v2558, 64
  %v2597 = vpop.permute.xlu0 %2596
  %2598 = vrot.lane.b32.xlu0 %v2559, 64
  %v2599 = vpop.permute.xlu0 %2598
  %2600 = vrot.lane.b32.xlu0 %v2560, 64
  %v2601 = vpop.permute.xlu0 %2600
  %2602 = vrot.lane.b32.xlu0 %v2561, 64
  %v2603 = vpop.permute.xlu0 %2602
  %2604 = vrot.lane.b32.xlu0 %v2562, 64
  %v2605 = vpop.permute.xlu0 %2604
  %2606 = vrot.lane.b32.xlu0 %v2563, 64
  %v2607 = vpop.permute.xlu0 %2606
  %2608 = vrot.lane.b32.xlu0 %v2564, 64
  %v2609 = vpop.permute.xlu0 %2608
  %2610 = vrot.lane.b32.xlu0 %v2565, 64
  %v2611 = vpop.permute.xlu0 %2610
  %2612 = vrot.lane.b32.xlu0 %v2566, 64
  %v2613 = vpop.permute.xlu0 %2612
  %2614 = vrot.lane.b32.xlu0 %v2567, 64
  %v2615 = vpop.permute.xlu0 %2614
  %v2632 = vsel %vm1061, %v981, %v2585
  %v2633 = vsel %vm1061, %v982, %v2587
  %v2634 = vsel %vm1061, %v983, %v2589
  %v2635 = vsel %vm1061, %v984, %v2591
  %v2636 = vsel %vm1061, %v985, %v2593
  %v2637 = vsel %vm1061, %v986, %v2595
  %v2638 = vsel %vm1061, %v987, %v2597
  %v2639 = vsel %vm1061, %v988, %v2599
  %v2640 = vsel %vm1061, %v989, %v2601
  %v2641 = vsel %vm1061, %v990, %v2603
  %v2642 = vsel %vm1061, %v991, %v2605
  %v2643 = vsel %vm1061, %v992, %v2607
  %v2644 = vsel %vm1061, %v993, %v2609
  %v2645 = vsel %vm1061, %v994, %v2611
  %v2646 = vsel %vm1061, %v995, %v2613
  %v2647 = vsel %vm1061, %v996, %v2615
  %v2648 = vpack.c.bf16 %v2633, %v2632
  %v2649 = vpack.c.bf16 %v2635, %v2634
  %v2650 = vpack.c.bf16 %v2637, %v2636
  %v2651 = vpack.c.bf16 %v2639, %v2638
  %v2652 = vpack.c.bf16 %v2641, %v2640
  %v2653 = vpack.c.bf16 %v2643, %v2642
  %v2654 = vpack.c.bf16 %v2645, %v2644
  %v2655 = vpack.c.bf16 %v2647, %v2646
  %2656 = vmatpush.bf16.msra.mxu0 %v1125
  %2657 = vmatpush.bf16.msra.mxu0 %v1124
  %2658 = vmatpush.bf16.msra.mxu0 %v1123
  %2659 = vmatpush.bf16.msra.mxu0 %v1122
  %2660 = vmatpush.bf16.msra.mxu0 %v1121
  %2661 = vmatpush.bf16.msra.mxu0 %v1120
  %2662 = vmatpush.bf16.msra.mxu0 %v1119
  %2663 = vmatpush.bf16.msra.mxu0 %v1118
  %2664 = vmatmul.bf16.gmra.mxu0 %v2648
  %v2665 = vpop.f32.mrf.mxu0
  %v2666 = vadd.f32 %v104, %v2665
  %v2667 = vpop.f32.mrf.mxu0
  %v2668 = vadd.f32 %v104, %v2667
  %2669 = vmatmul.bf16.gmra.mxu0 %v2649
  %v2670 = vpop.f32.mrf.mxu0
  %v2671 = vadd.f32 %v104, %v2670
  %v2672 = vpop.f32.mrf.mxu0
  %v2673 = vadd.f32 %v104, %v2672
  %2674 = vmatmul.bf16.gmra.mxu0 %v2650
  %v2675 = vpop.f32.mrf.mxu0
  %v2676 = vadd.f32 %v104, %v2675
  %v2677 = vpop.f32.mrf.mxu0
  %v2678 = vadd.f32 %v104, %v2677
  %2679 = vmatmul.bf16.gmra.mxu0 %v2651
  %v2680 = vpop.f32.mrf.mxu0
  %v2681 = vadd.f32 %v104, %v2680
  %v2682 = vpop.f32.mrf.mxu0
  %v2683 = vadd.f32 %v104, %v2682
  %2684 = vmatmul.bf16.gmra.mxu0 %v2652
  %v2685 = vpop.f32.mrf.mxu0
  %v2686 = vadd.f32 %v104, %v2685
  %v2687 = vpop.f32.mrf.mxu0
  %v2688 = vadd.f32 %v104, %v2687
  %2689 = vmatmul.bf16.gmra.mxu0 %v2653
  %v2690 = vpop.f32.mrf.mxu0
  %v2691 = vadd.f32 %v104, %v2690
  %v2692 = vpop.f32.mrf.mxu0
  %v2693 = vadd.f32 %v104, %v2692
  %2694 = vmatmul.bf16.gmra.mxu0 %v2654
  %v2695 = vpop.f32.mrf.mxu0
  %v2696 = vadd.f32 %v104, %v2695
  %v2697 = vpop.f32.mrf.mxu0
  %v2698 = vadd.f32 %v104, %v2697
  %2699 = vmatmul.bf16.gmra.mxu0 %v2655
  %v2700 = vpop.f32.mrf.mxu0
  %v2701 = vadd.f32 %v104, %v2700
  %v2702 = vpop.f32.mrf.mxu0
  %v2703 = vadd.f32 %v104, %v2702
  %2704 = vdwg.mxu0
  %v2705 = vtanh.pop %v2666
  %v2706 = vtanh.pop %v2668
  %v2707 = vtanh.pop %v2671
  %v2708 = vtanh.pop %v2673
  %v2709 = vtanh.pop %v2676
  %v2710 = vtanh.pop %v2678
  %v2711 = vtanh.pop %v2681
  %v2712 = vtanh.pop %v2683
  %v2713 = vtanh.pop %v2686
  %v2714 = vtanh.pop %v2688
  %v2715 = vtanh.pop %v2691
  %v2716 = vtanh.pop %v2693
  %v2717 = vtanh.pop %v2696
  %v2718 = vtanh.pop %v2698
  %v2719 = vtanh.pop %v2701
  %v2720 = vtanh.pop %v2703
  %v2721 = vpack.c.bf16 %v2706, %v2705
  %v2722 = vpack.c.bf16 %v2708, %v2707
  %v2723 = vpack.c.bf16 %v2710, %v2709
  %v2724 = vpack.c.bf16 %v2712, %v2711
  %v2725 = vpack.c.bf16 %v2714, %v2713
  %v2726 = vpack.c.bf16 %v2716, %v2715
  %v2727 = vpack.c.bf16 %v2718, %v2717
  %v2728 = vpack.c.bf16 %v2720, %v2719
  %v2730 = vsel %vm980, %v2721, 0
  %v2733 = vsel %vm980, %v2722, 0
  %v2736 = vsel %vm980, %v2723, 0
  %v2739 = vsel %vm980, %v2724, 0
  %v2742 = vsel %vm980, %v2725, 0
  %v2745 = vsel %vm980, %v2726, 0
  %v2748 = vsel %vm980, %v2727, 0
  %v2751 = vsel %vm980, %v2728, 0
  %2753 = vmatpush.bf16.msra.mxu0 0
  %2754 = vmatpush.bf16.msra.mxu0 0
  %2755 = vmatpush.bf16.msra.mxu0 0
  %2756 = vmatpush.bf16.msra.mxu0 0
  %2757 = vmatpush.bf16.msra.mxu0 0
  %2758 = vmatpush.bf16.msra.mxu0 0
  %2759 = vmatpush.bf16.msra.mxu0 %v1216
  %2760 = vmatpush.bf16.msra.mxu0 %v1215
  %2761 = vmatmul.bf16.gmra.mxu0 %v2730
  %v2762 = vpop.f32.mrf.mxu0
  %v2763 = vadd.f32 %v108, %v2762
  %v2764 = vpop.f32.mrf.mxu0
  %v2765 = vadd.f32 %v108, %v2764
  %2766 = vmatmul.bf16.gmra.mxu0 %v2733
  %v2767 = vpop.f32.mrf.mxu0
  %v2768 = vadd.f32 %v108, %v2767
  %v2769 = vpop.f32.mrf.mxu0
  %v2770 = vadd.f32 %v108, %v2769
  %2771 = vmatmul.bf16.gmra.mxu0 %v2736
  %v2772 = vpop.f32.mrf.mxu0
  %v2773 = vadd.f32 %v108, %v2772
  %v2774 = vpop.f32.mrf.mxu0
  %v2775 = vadd.f32 %v108, %v2774
  %2776 = vmatmul.bf16.gmra.mxu0 %v2739
  %v2777 = vpop.f32.mrf.mxu0
  %v2778 = vadd.f32 %v108, %v2777
  %v2779 = vpop.f32.mrf.mxu0
  %v2780 = vadd.f32 %v108, %v2779
  %2781 = vmatmul.bf16.gmra.mxu0 %v2742
  %v2782 = vpop.f32.mrf.mxu0
  %v2783 = vadd.f32 %v108, %v2782
  %v2784 = vpop.f32.mrf.mxu0
  %v2785 = vadd.f32 %v108, %v2784
  %2786 = vmatmul.bf16.gmra.mxu0 %v2745
  %v2787 = vpop.f32.mrf.mxu0
  %v2788 = vadd.f32 %v108, %v2787
  %v2789 = vpop.f32.mrf.mxu0
  %v2790 = vadd.f32 %v108, %v2789
  %2791 = vmatmul.bf16.gmra.mxu0 %v2748
  %v2792 = vpop.f32.mrf.mxu0
  %v2793 = vadd.f32 %v108, %v2792
  %v2794 = vpop.f32.mrf.mxu0
  %v2795 = vadd.f32 %v108, %v2794
  %2796 = vmatmul.bf16.gmra.mxu0 %v2751
  %v2797 = vpop.f32.mrf.mxu0
  %v2798 = vadd.f32 %v108, %v2797
  %v2799 = vpop.f32.mrf.mxu0
  %v2800 = vadd.f32 %v108, %v2799
  %2801 = vdwg.mxu0
  %v2802 = vsel %vm1292, %v2763, -inf
  %v2803 = vsel %vm1292, %v2765, -inf
  %v2804 = vsel %vm1292, %v2768, -inf
  %v2805 = vsel %vm1292, %v2770, -inf
  %v2806 = vsel %vm1292, %v2773, -inf
  %v2807 = vmax.f32 %v2802, %v2806
  %v2808 = vsel %vm1292, %v2775, -inf
  %v2809 = vmax.f32 %v2803, %v2808
  %v2810 = vsel %vm1292, %v2778, -inf
  %v2811 = vmax.f32 %v2804, %v2810
  %v2812 = vsel %vm1292, %v2780, -inf
  %v2813 = vmax.f32 %v2805, %v2812
  %v2814 = vsel %vm1292, %v2783, -inf
  %v2815 = vmax.f32 %v2807, %v2814
  %v2816 = vsel %vm1292, %v2785, -inf
  %v2817 = vmax.f32 %v2809, %v2816
  %v2818 = vsel %vm1292, %v2788, -inf
  %v2819 = vmax.f32 %v2811, %v2818
  %v2820 = vsel %vm1292, %v2790, -inf
  %v2821 = vmax.f32 %v2813, %v2820
  %v2822 = vsel %vm1292, %v2793, -inf
  %v2823 = vmax.f32 %v2815, %v2822
  %v2824 = vsel %vm1292, %v2795, -inf
  %v2825 = vmax.f32 %v2817, %v2824
  %v2826 = vsel %vm1292, %v2798, -inf
  %v2827 = vmax.f32 %v2819, %v2826
  %v2828 = vsel %vm1292, %v2800, -inf
  %v2829 = vmax.f32 %v2821, %v2828
  %v2830 = vmax.f32 %v2823, %v2825
  %v2831 = vmax.f32 %v2827, %v2829
  %v2832 = vmax.f32 %v2830, %v2831
  %2833 = vmax.xlane.f32.xlu0 %v2832
  %v2834 = vpop.xlane.xlu0 %2833
  %v2835 = vrot.slane %v2834, 4
  %v2836 = vmax.f32 %v2834, %v2835
  %v2837 = vrot.slane %v2836, 2
  %v2838 = vmax.f32 %v2836, %v2837
  %v2839 = vrot.slane %v2838, 1
  %v2840 = vmax.f32 %v2838, %v2839
  %s2841 = vtos %v2840
  %v2842 = vstv %s2841
  %v2843 = vsub.f32 %v2763, %v2842
  %v2844 = vsub.f32 %v2765, %v2842
  %v2845 = vsub.f32 %v2768, %v2842
  %v2846 = vsub.f32 %v2770, %v2842
  %v2847 = vsub.f32 %v2773, %v2842
  %v2848 = vsub.f32 %v2775, %v2842
  %v2849 = vsub.f32 %v2778, %v2842
  %v2850 = vsub.f32 %v2780, %v2842
  %v2851 = vsub.f32 %v2783, %v2842
  %v2852 = vsub.f32 %v2785, %v2842
  %v2853 = vsub.f32 %v2788, %v2842
  %v2854 = vsub.f32 %v2790, %v2842
  %v2855 = vsub.f32 %v2793, %v2842
  %v2856 = vsub.f32 %v2795, %v2842
  %v2857 = vsub.f32 %v2798, %v2842
  %v2858 = vsub.f32 %v2800, %v2842
  %v2859 = vmul.f32 %v2843, 1.442695
  %v2860 = vpow.pop %v2859
  %v2861 = vmul.f32 %v2844, 1.442695
  %v2862 = vpow.pop %v2861
  %v2863 = vmul.f32 %v2845, 1.442695
  %v2864 = vpow.pop %v2863
  %v2865 = vmul.f32 %v2846, 1.442695
  %v2866 = vpow.pop %v2865
  %v2867 = vmul.f32 %v2847, 1.442695
  %v2868 = vpow.pop %v2867
  %v2869 = vmul.f32 %v2848, 1.442695
  %v2870 = vpow.pop %v2869
  %v2871 = vmul.f32 %v2849, 1.442695
  %v2872 = vpow.pop %v2871
  %v2873 = vmul.f32 %v2850, 1.442695
  %v2874 = vpow.pop %v2873
  %v2875 = vmul.f32 %v2851, 1.442695
  %v2876 = vpow.pop %v2875
  %v2877 = vmul.f32 %v2852, 1.442695
  %v2878 = vpow.pop %v2877
  %v2879 = vmul.f32 %v2853, 1.442695
  %v2880 = vpow.pop %v2879
  %v2881 = vmul.f32 %v2854, 1.442695
  %v2882 = vpow.pop %v2881
  %v2883 = vmul.f32 %v2855, 1.442695
  %v2884 = vpow.pop %v2883
  %v2885 = vmul.f32 %v2856, 1.442695
  %v2886 = vpow.pop %v2885
  %v2887 = vmul.f32 %v2857, 1.442695
  %v2888 = vpow.pop %v2887
  %v2889 = vmul.f32 %v2858, 1.442695
  %v2890 = vpow.pop %v2889
  %2892 = vset.pattern.permute.xlu0 0
  %2893 = vperm.xlu0 %2892, %v2860
  %v2894 = vpop.permute.xlu0 %2893
  %2897 = vset.pattern.permute.xlu0 0
  %2898 = vperm.xlu0 %2897, %v2862
  %v2899 = vpop.permute.xlu0 %2898
  %2902 = vset.pattern.permute.xlu0 0
  %2903 = vperm.xlu0 %2902, %v2864
  %v2904 = vpop.permute.xlu0 %2903
  %2907 = vset.pattern.permute.xlu0 0
  %2908 = vperm.xlu0 %2907, %v2866
  %v2909 = vpop.permute.xlu0 %2908
  %2912 = vset.pattern.permute.xlu0 0
  %2913 = vperm.xlu0 %2912, %v2868
  %v2914 = vpop.permute.xlu0 %2913
  %2917 = vset.pattern.permute.xlu0 0
  %2918 = vperm.xlu0 %2917, %v2870
  %v2919 = vpop.permute.xlu0 %2918
  %2922 = vset.pattern.permute.xlu0 0
  %2923 = vperm.xlu0 %2922, %v2872
  %v2924 = vpop.permute.xlu0 %2923
  %2927 = vset.pattern.permute.xlu0 0
  %2928 = vperm.xlu0 %2927, %v2874
  %v2929 = vpop.permute.xlu0 %2928
  %2932 = vset.pattern.permute.xlu0 0
  %2933 = vperm.xlu0 %2932, %v2876
  %v2934 = vpop.permute.xlu0 %2933
  %2937 = vset.pattern.permute.xlu0 0
  %2938 = vperm.xlu0 %2937, %v2878
  %v2939 = vpop.permute.xlu0 %2938
  %2942 = vset.pattern.permute.xlu0 0
  %2943 = vperm.xlu0 %2942, %v2880
  %v2944 = vpop.permute.xlu0 %2943
  %2947 = vset.pattern.permute.xlu0 0
  %2948 = vperm.xlu0 %2947, %v2882
  %v2949 = vpop.permute.xlu0 %2948
  %2952 = vset.pattern.permute.xlu0 0
  %2953 = vperm.xlu0 %2952, %v2884
  %v2954 = vpop.permute.xlu0 %2953
  %2957 = vset.pattern.permute.xlu0 0
  %2958 = vperm.xlu0 %2957, %v2886
  %v2959 = vpop.permute.xlu0 %2958
  %2962 = vset.pattern.permute.xlu0 0
  %2963 = vperm.xlu0 %2962, %v2888
  %v2964 = vpop.permute.xlu0 %2963
  %2967 = vset.pattern.permute.xlu0 0
  %2968 = vperm.xlu0 %2967, %v2890
  %v2969 = vpop.permute.xlu0 %2968
  %v2971 = vmul.f32 %v2894, %v716
  %v2972 = vmul.f32 %v2899, %v718
  %v2973 = vmul.f32 %v2904, %v721
  %v2974 = vmul.f32 %v2909, %v723
  %v2975 = vmul.f32 %v2914, %v726
  %v2976 = vmul.f32 %v2919, %v728
  %v2977 = vmul.f32 %v2924, %v731
  %v2978 = vmul.f32 %v2929, %v733
  %v2979 = vmul.f32 %v2934, %v736
  %v2980 = vmul.f32 %v2939, %v738
  %v2981 = vmul.f32 %v2944, %v741
  %v2982 = vmul.f32 %v2949, %v743
  %v2983 = vmul.f32 %v2954, %v746
  %v2984 = vmul.f32 %v2959, %v748
  %v2985 = vmul.f32 %v2964, %v751
  %v2986 = vmul.f32 %v2969, %v753
  %2987 = vrot.lane.b32.xlu0 %v2860, 32
  %v2988 = vpop.permute.xlu0 %2987
  %2989 = vrot.lane.b32.xlu0 %v2862, 32
  %v2990 = vpop.permute.xlu0 %2989
  %2991 = vrot.lane.b32.xlu0 %v2864, 32
  %v2992 = vpop.permute.xlu0 %2991
  %2993 = vrot.lane.b32.xlu0 %v2866, 32
  %v2994 = vpop.permute.xlu0 %2993
  %2995 = vrot.lane.b32.xlu0 %v2868, 32
  %v2996 = vpop.permute.xlu0 %2995
  %2997 = vrot.lane.b32.xlu0 %v2870, 32
  %v2998 = vpop.permute.xlu0 %2997
  %2999 = vrot.lane.b32.xlu0 %v2872, 32
  %v3000 = vpop.permute.xlu0 %2999
  %3001 = vrot.lane.b32.xlu0 %v2874, 32
  %v3002 = vpop.permute.xlu0 %3001
  %3003 = vrot.lane.b32.xlu0 %v2876, 32
  %v3004 = vpop.permute.xlu0 %3003
  %3005 = vrot.lane.b32.xlu0 %v2878, 32
  %v3006 = vpop.permute.xlu0 %3005
  %3007 = vrot.lane.b32.xlu0 %v2880, 32
  %v3008 = vpop.permute.xlu0 %3007
  %3009 = vrot.lane.b32.xlu0 %v2882, 32
  %v3010 = vpop.permute.xlu0 %3009
  %3011 = vrot.lane.b32.xlu0 %v2884, 32
  %v3012 = vpop.permute.xlu0 %3011
  %3013 = vrot.lane.b32.xlu0 %v2886, 32
  %v3014 = vpop.permute.xlu0 %3013
  %3015 = vrot.lane.b32.xlu0 %v2888, 32
  %v3016 = vpop.permute.xlu0 %3015
  %3017 = vrot.lane.b32.xlu0 %v2890, 32
  %v3018 = vpop.permute.xlu0 %3017
  %v3035 = vsel %vm980, %v2971, %v2988
  %v3036 = vsel %vm980, %v2972, %v2990
  %v3037 = vsel %vm980, %v2973, %v2992
  %v3038 = vsel %vm980, %v2974, %v2994
  %v3039 = vsel %vm980, %v2975, %v2996
  %v3040 = vsel %vm980, %v2976, %v2998
  %v3041 = vsel %vm980, %v2977, %v3000
  %v3042 = vsel %vm980, %v2978, %v3002
  %v3043 = vsel %vm980, %v2979, %v3004
  %v3044 = vsel %vm980, %v2980, %v3006
  %v3045 = vsel %vm980, %v2981, %v3008
  %v3046 = vsel %vm980, %v2982, %v3010
  %v3047 = vsel %vm980, %v2983, %v3012
  %v3048 = vsel %vm980, %v2984, %v3014
  %v3049 = vsel %vm980, %v2985, %v3016
  %v3050 = vsel %vm980, %v2986, %v3018
  %v3051 = vpack.c.bf16 %v3036, %v3035
  %v3052 = vpack.c.bf16 %v3038, %v3037
  %v3053 = vpack.c.bf16 %v3040, %v3039
  %v3054 = vpack.c.bf16 %v3042, %v3041
  %v3055 = vpack.c.bf16 %v3044, %v3043
  %v3056 = vpack.c.bf16 %v3046, %v3045
  %v3057 = vpack.c.bf16 %v3048, %v3047
  %v3058 = vpack.c.bf16 %v3050, %v3049
  %3059 = vmatpush.bf16.msra.mxu0 %v3058
  %3060 = vmatpush.bf16.msra.mxu0 %v3057
  %3061 = vmatpush.bf16.msra.mxu0 %v3056
  %3062 = vmatpush.bf16.msra.mxu0 %v3055
  %3063 = vmatpush.bf16.msra.mxu0 %v3054
  %3064 = vmatpush.bf16.msra.mxu0 %v3053
  %3065 = vmatpush.bf16.msra.mxu0 %v3052
  %3066 = vmatpush.bf16.msra.mxu0 %v3051
  %3067 = vmatmul.bf16.gmra.mxu0 %v1554
  %v3068 = vpop.f32.mrf.mxu0
  %v3069 = vadd.f32 0.0, %v3068
  %v3070 = vpop.f32.mrf.mxu0
  %v3071 = vadd.f32 0.0, %v3070
  %3072 = vdwg.mxu0
  %v3073 = vrcp.pop %v3069
  %v3074 = vrcp.pop %v3071
  %3076 = vset.pattern.permute.xlu0 32
  %3077 = vperm.xlu0 %3076, %v3073
  %v3078 = vpop.permute.xlu0 %3077
  %3081 = vset.pattern.permute.xlu0 32
  %3082 = vperm.xlu0 %3081, %v3074
  %v3083 = vpop.permute.xlu0 %3082
  %v3085 = vmul.f32 %v3069, %v3078
  %v3086 = vmul.f32 %v3071, %v3083
  %3089 = vrot.lane.b32.xlu0 %v3085, 32
  %v3090 = vpop.permute.xlu0 %3089
  %3091 = vrot.lane.b32.xlu0 %v3086, 32
  %v3092 = vpop.permute.xlu0 %3091
  %v3095 = vsel %vm980, %v2388, %v3090
  %v3096 = vsel %vm980, %v2389, %v3092
  %v3097 = vsel %vm1061, %v3095, %v1595
  %v3098 = vsel %vm1061, %v3096, %v1597
  %v3099 = vpack.c.bf16 %v3098, %v3097
  %v3101 = vsel %vm1641, %v3099, 0
  %3103 = vmatpush.bf16.msra.mxu0 0
  %3104 = vmatpush.bf16.msra.mxu0 0
  %3105 = vmatpush.bf16.msra.mxu0 %v1634
  %3106 = vmatpush.bf16.msra.mxu0 %v1633
  %3107 = vmatpush.bf16.msra.mxu0 %v1632
  %3108 = vmatpush.bf16.msra.mxu0 %v1631
  %3109 = vmatpush.bf16.msra.mxu0 %v1630
  %3110 = vmatpush.bf16.msra.mxu0 %v1629
  %3111 = vmatmul.bf16.gmra.mxu0 %v3101
  %v3112 = vpop.f32.mrf.mxu0
  %v3113 = vadd.f32 %v112, %v3112
  %v3114 = vpop.f32.mrf.mxu0
  %v3115 = vadd.f32 %v112, %v3114
  %3116 = vdwg.mxu0
  %v3117 = vmax.f32 %v3113, 0.0
  %v3118 = vmax.f32 %v3115, 0.0
  %v3119 = vpack.c.bf16 %v3118, %v3117
  %v3120 = vld [vmem:[%s9] sm:$0xf]
  %v3121 = vld [vmem:[%s9 + $0x4] sm:$0xf]
  %v3122 = vld [vmem:[%s9 + $0x8] sm:$0xf]
  %v3123 = vld [vmem:[%s9 + $0xc] sm:$0xf]
  %v3128 = vunpack.c.l.b16 %v3120
  %v3129 = vunpack.c.l.b16 %v3121
  %v3130 = vunpack.c.l.b16 %v3122
  %v3131 = vunpack.c.l.b16 %v3123
  %v3132 = vpack.c.b16 %v3129, %v3128
  %v3133 = vpack.c.b16 %v3131, %v3130
  %3138 = vrot.lane.b32.xlu0 %v614, 96
  %v3139 = vpop.permute.xlu0 %3138
  %3140 = vrot.lane.b32.xlu0 %v616, 96
  %v3141 = vpop.permute.xlu0 %3140
  %v3145 = vsel %vm980, %v3119, 0
  %3147 = vmatpush.bf16.msra.mxu0 0
  %3148 = vmatpush.bf16.msra.mxu0 0
  %3149 = vmatpush.bf16.msra.mxu0 0
  %3150 = vmatpush.bf16.msra.mxu0 0
  %3151 = vmatpush.bf16.msra.mxu0 0
  %3152 = vmatpush.bf16.msra.mxu0 0
  %3153 = vmatpush.bf16.msra.mxu0 %v3133
  %3154 = vmatpush.bf16.msra.mxu0 %v3132
  %3155 = vmatmul.bf16.gmra.mxu0 %v3145
  %v3156 = vpop.f32.mrf.mxu0
  %v3157 = vadd.f32 %v3139, %v3156
  %v3158 = vpop.f32.mrf.mxu0
  %v3159 = vadd.f32 %v3141, %v3158
  %3160 = vdwg.mxu0
  %v3161 = vld [vmem:[#allocation3] sm:$0x1]
  %v3163 = vperm.slane %v3161, 0
  %v3165 = vadd.f32 %v3157, %v3163
  %v3166 = vadd.f32 %v3159, %v3163
  %3167 = vst.msk [vmem:[%s14] sm:$0xff] %vm1292, %v3165
  %3168 = vst.msk [vmem:[%s14 + $0x8] sm:$0xff] %vm1292, %v3166
  // Predicated region
  $region58: #{tpu_custom_call.1} parent=0 // pred_check
    _
  $region59: #{tpu_custom_call.1} parent=0 // pred_check_branch
    %3170 = sbr.rel (0) target = $region61
  $region60: #{tpu_custom_call.1} parent=0 // pred_region
    _
  $region61: #{tpu_custom_call.1} parent=0 // pred_fallthru
    _
  // Predicated region
  $region62: #{tpu_custom_call.1} parent=0 // pred_check
    _
  $region63: #{tpu_custom_call.1} parent=0 // pred_check_branch
    %3172 = sbr.rel (0) target = $region65
  $region64: #{tpu_custom_call.1} parent=0 // pred_region
    _
  $region65: #{tpu_custom_call.1} parent=0 // pred_fallthru
    _

</llo_original>
